<compile_context>
chip_gen: v7x
topology: tpu7x:2x2x1
jax: 0.10.0
libtpu: 0.0.40
codegen_flags: <defaults>
</compile_context>

<pallas_src>
import functools

import jax
import jax.numpy as jnp
from jax.experimental import pallas as pl
from jax.experimental.pallas import tpu as pltpu


# ----------------------------------------------------------------------------
# Generic lane-dense matmul kernel: out(N, M) = act(W(N, K) @ X(K, M) + b(N, 1))
# Used for both conv (X = 9-tap im2col columns) and transposed conv
# (X = activations directly).
# ----------------------------------------------------------------------------
def _matmul_cm_kernel(w_ref, x_ref, b_ref, o_ref, *, act):
    acc = jnp.dot(w_ref[...], x_ref[...], preferred_element_type=jnp.float32)
    acc = acc + b_ref[...]                      # (N, 1) broadcasts over lanes (M)
    if act == "relu":
        acc = jnp.maximum(acc, 0.0)
    elif act == "sigmoid":
        # exp + reciprocal run on the (otherwise idle) EUP slot
        acc = pl.reciprocal(1.0 + jnp.exp(-acc), approx=True)
    o_ref[...] = acc.astype(o_ref.dtype)


def matmul_cm(w, x, b, act="none", out_dtype=jnp.bfloat16, max_tile_m=512):
    """W:(N,K) bf16, X:(K,M) bf16, b:(N,1) f32 -> act(W@X + b):(N,M).

    M (the large dim) sits on the lane axis -> lane-dense stores.  M is tiled
    with a 'parallel' grid so the kernel software-pipelines and scales with
    batch / spatial size; W and b keep block index (0,0), so they stay
    resident in VMEM across all M tiles.
    """
    N, K = w.shape
    K2, M = x.shape
    assert K == K2
    tm = M if M <= max_tile_m else max_tile_m
    return pl.pallas_call(
        functools.partial(_matmul_cm_kernel, act=act),
        grid=(pl.cdiv(M, tm),),
        in_specs=[
            pl.BlockSpec((N, K), lambda i: (0, 0)),
            pl.BlockSpec((K, tm), lambda i: (0, i)),
            pl.BlockSpec((N, 1), lambda i: (0, 0)),
        ],
        out_specs=pl.BlockSpec((N, tm), lambda i: (0, i)),
        out_shape=jax.ShapeDtypeStruct((N, M), out_dtype),
        compiler_params=pltpu.CompilerParams(
            dimension_semantics=("parallel",)),
    )(w.astype(jnp.bfloat16), x.astype(jnp.bfloat16), b.astype(jnp.float32))


# ----------------------------------------------------------------------------
# Fused FC core kernel: encoder FC stack + reparametrization + decoder FC stack
# in a single pallas_call (all activations stay in VMEM / vregs).
# ----------------------------------------------------------------------------
def _make_fc_core_kernel(n_enc, n_dec, n_z):
    def kernel(*refs):
        flat_ref, eps_ref, lab_ref = refs[:3]
        pos = 3
        enc = [(refs[pos + 2 * i], refs[pos + 2 * i + 1]) for i in range(n_enc)]
        pos += 2 * n_enc
        dec = [(refs[pos + 2 * i], refs[pos + 2 * i + 1]) for i in range(n_dec)]
        pos += 2 * n_dec
        mean_ref, logsig_ref, dfeat_ref = refs[pos], refs[pos + 1], refs[pos + 2]

        # ---- encoder FC stack: ReLU on all but the last layer ----
        h = flat_ref[...]                                   # bf16 (B, flat)
        for i, (w_ref, b_ref) in enumerate(enc):
            acc = jnp.dot(h, w_ref[...], preferred_element_type=jnp.float32)
            acc = acc + b_ref[...]                          # f32 epilogue
            if i < n_enc - 1:
                h = jnp.maximum(acc, 0.0).astype(jnp.bfloat16)
            else:
                h = acc                                     # f32 (B, 2*n_z)

        mean = h[:, :n_z]
        logsig = h[:, n_z:]
        mean_ref[...] = mean
        logsig_ref[...] = logsig

        # ---- reparametrization: sigma = exp(log_sigma_sq).sqrt() ----
        z = mean + eps_ref[...] * jnp.exp(0.5 * logsig)     # f32 (B, n_z)

        # ---- decoder FC stack (ReLU). The [z | lab] concat is folded into a
        #      row-split of the first weight: cat(z,lab)@W0 = z@W0[:nz]+lab@W0[nz:]
        w0 = dec[0][0][...].astype(jnp.float32)
        d = jnp.dot(z, w0[:n_z, :], preferred_element_type=jnp.float32)
        d = d + jnp.dot(lab_ref[...], w0[n_z:, :],
                        preferred_element_type=jnp.float32)
        d = jnp.maximum(d + dec[0][1][...], 0.0)
        for (w_ref, b_ref) in dec[1:]:
            acc = jnp.dot(d.astype(jnp.bfloat16), w_ref[...],
                          preferred_element_type=jnp.float32)
            d = jnp.maximum(acc + b_ref[...], 0.0)
        dfeat_ref[...] = d.astype(dfeat_ref.dtype)

    return kernel


def fc_core(flat, eps, lab, enc_fc, dec_fc, n_z):
    B = flat.shape[0]
    n_enc, n_dec = len(enc_fc), len(dec_fc)
    operands = [flat.astype(jnp.bfloat16),
                eps.astype(jnp.float32),
                lab.astype(jnp.float32)]
    in_specs = [pl.BlockSpec(operands[0].shape, lambda i: (0, 0)),
                pl.BlockSpec(operands[1].shape, lambda i: (0, 0)),
                pl.BlockSpec(operands[2].shape, lambda i: (0, 0))]
    for (w, b) in list(enc_fc) + list(dec_fc):
        operands += [w, b]
        in_specs += [pl.BlockSpec(w.shape, lambda i: (0, 0)),
                     pl.BlockSpec(b.shape, lambda i: (0, 0))]
    dflat = dec_fc[-1][0].shape[1]
    out_shape = (jax.ShapeDtypeStruct((B, n_z), jnp.float32),
                 jax.ShapeDtypeStruct((B, n_z), jnp.float32),
                 jax.ShapeDtypeStruct((B, dflat), jnp.bfloat16))
    out_specs = (pl.BlockSpec((B, n_z), lambda i: (0, 0)),
                 pl.BlockSpec((B, n_z), lambda i: (0, 0)),
                 pl.BlockSpec((B, dflat), lambda i: (0, 0)))
    return pl.pallas_call(
        _make_fc_core_kernel(n_enc, n_dec, n_z),
        grid=(1,),
        in_specs=in_specs,
        out_specs=out_specs,
        out_shape=out_shape,
        compiler_params=pltpu.CompilerParams(
            dimension_semantics=("arbitrary",)),
    )(*operands)


# ----------------------------------------------------------------------------
# Conv / transposed-conv wrappers (channels-major layout, cheap XLA glue only)
# ----------------------------------------------------------------------------
def conv2d_s2_cm(x, w_flat, b, act="relu"):
    """x: (Cin, B, H, W) bf16 -> (Cout, B, H//2, W//2) bf16.

    Conv2d(3x3, stride 2, pad 1).  The 9 taps are strided slices of the padded
    input (no big transposes), stacked to a (Cin*9, M) column matrix feeding a
    single lane-dense matmul kernel.
    """
    # TODO(synk): tap extraction could move in-kernel with strided pl.ds to
    # avoid the 9x column materialization; kept as XLA glue for robustness.
    Cin, B, H, W = x.shape
    Ho, Wo = H // 2, W // 2
    M = B * Ho * Wo
    xp = jnp.pad(x, ((0, 0), (0, 0), (1, 1), (1, 1)))
    taps = []
    for di in range(3):
        for dj in range(3):
            taps.append(
                xp[:, :, di:di + 2 * Ho:2, dj:dj + 2 * Wo:2].reshape(Cin, M))
    cols = jnp.stack(taps, axis=1).reshape(Cin * 9, M)   # row order c*9 + (di*3+dj)
    out = matmul_cm(w_flat, cols, b, act=act, out_dtype=jnp.bfloat16)
    return out.reshape(-1, B, Ho, Wo)


def conv_transpose2d_k2s2_cm(x, w_mat, b4, act, out_dtype):
    """x: (Cin, B, H, W) -> (Cout, B, 2H, 2W). ConvTranspose2d(kernel 2, stride 2).

    kernel==stride -> no output overlap, so the whole layer is one matmul with
    rows ordered o*4 + di*2 + dj, followed by a cheap pixel-interleave reshape.
    """
    Cin, B, H, W = x.shape
    Cout = w_mat.shape[0] // 4
    out = matmul_cm(w_mat, x.reshape(Cin, B * H * W), b4, act=act,
                    out_dtype=out_dtype)                 # (Cout*4, B*H*W)
    o = out.reshape(Cout, 2, 2, B, H, W).transpose(0, 3, 4, 1, 5, 2)
    return o.reshape(Cout, B, 2 * H, 2 * W)


# ----------------------------------------------------------------------------
# Deterministic parameter construction (weights pre-packed ONCE for the kernels)
# ----------------------------------------------------------------------------
def make_params(key, image_shape, enc_kernels, dec_kernels, n_z, n_label,
                fc_layers, hidden):
    keys = iter(jax.random.split(key, 64))
    C, H, W = image_shape
    L = len(enc_kernels)
    hb, wb = H // 2 ** L, W // 2 ** L

    def dense(k, fan_in, fan_out):
        k1, k2 = jax.random.split(k)
        w = jax.random.normal(k1, (fan_in, fan_out), jnp.float32) * (1.0 / jnp.sqrt(fan_in))
        b = jax.random.normal(k2, (fan_out,), jnp.float32) * 0.01
        return w.astype(jnp.bfloat16), b.reshape(1, fan_out)   # bf16 W, f32 bias

    p = {}
    # encoder convs: Conv2d(cin, co, 3, stride=2, padding=1); weight (co, cin, 3, 3)
    # pre-reshaped to (co, cin*9) so the layer is one lane-dense matmul.
    p["enc_conv"] = []
    cin = C
    for co in enc_kernels:
        k1, k2 = jax.random.split(next(keys))
        w = jax.random.normal(k1, (co, cin, 3, 3), jnp.float32) * (1.0 / jnp.sqrt(cin * 9))
        b = jax.random.normal(k2, (co,), jnp.float32) * 0.01
        p["enc_conv"].append((w.reshape(co, cin * 9).astype(jnp.bfloat16),
                              b.reshape(co, 1)))
        cin = co
    # encoder fc: flat -> hidden ... -> 2*n_z
    flat = enc_kernels[-1] * hb * wb
    dims = [flat] + [hidden] * (fc_layers - 1) + [2 * n_z]
    p["enc_fc"] = [dense(next(keys), dims[i], dims[i + 1]) for i in range(fc_layers)]
    # decoder fc: (n_z+n_label) -> hidden ... -> dec_kernels[0]*hb*wb
    dflat = dec_kernels[0] * hb * wb
    ddims = [n_z + n_label] + [hidden] * (fc_layers - 1) + [dflat]
    p["dec_fc"] = [dense(next(keys), ddims[i], ddims[i + 1]) for i in range(fc_layers)]
    # decoder transposed convs: ConvTranspose2d(ci, co, 2, stride=2);
    # weight (ci, co, 2, 2) pre-packed to (co*4, ci), rows ordered o*4 + di*2 + dj.
    p["dec_conv"] = []
    chans = list(dec_kernels) + [C]
    for i in range(len(dec_kernels)):
        ci, co = chans[i], chans[i + 1]
        k1, k2 = jax.random.split(next(keys))
        w = jax.random.normal(k1, (ci, co, 2, 2), jnp.float32) * (1.0 / jnp.sqrt(ci * 4))
        b = jax.random.normal(k2, (co,), jnp.float32) * 0.01
        wmat = jnp.transpose(w, (1, 2, 3, 0)).reshape(co * 4, ci).astype(jnp.bfloat16)
        b4 = jnp.repeat(b, 4).reshape(co * 4, 1)
        p["dec_conv"].append((wmat, b4))
    shapes = (tuple(image_shape), hb, wb, dec_kernels[0])
    return p, shapes


# ----------------------------------------------------------------------------
# CVAE forward (forward_train semantics: returns output, mean, log_sigma_sq)
# ----------------------------------------------------------------------------
@functools.partial(jax.jit, static_argnames=("n_z", "shapes"))
def cvae_forward(params, x, lab, eps, *, n_z, shapes):
    _img, hb, wb, c0 = shapes
    B = x.shape[0]

    # ---- encoder conv stack (channels-major (C, B, H, W), bf16) ----
    h = jnp.transpose(x, (1, 0, 2, 3)).astype(jnp.bfloat16)
    for (w, b) in params["enc_conv"]:
        h = conv2d_s2_cm(h, w, b, act="relu")

    # PyTorch .view(B, -1) flatten order = (C, H, W) per batch element
    flat = jnp.transpose(h, (1, 0, 2, 3)).reshape(B, -1)

    # ---- fused: encoder FCs + split + reparam + concat(lab) + decoder FCs ----
    mean, log_sigma_sq, dfeat = fc_core(flat, eps, lab,
                                        params["enc_fc"], params["dec_fc"], n_z)

    # ---- decoder transposed-conv stack ----
    d = jnp.transpose(dfeat.reshape(B, c0, hb, wb), (1, 0, 2, 3))   # (c0, B, hb, wb)
    n_dc = len(params["dec_conv"])
    for i, (w, b4) in enumerate(params["dec_conv"]):
        last = i == n_dc - 1
        d = conv_transpose2d_k2s2_cm(
            d, w, b4,
            act="sigmoid" if last else "relu",
            out_dtype=jnp.float32 if last else jnp.bfloat16)
    out = jnp.transpose(d, (1, 0, 2, 3))                            # NCHW
    return out, mean, log_sigma_sq


if __name__ == "__main__":
    # Small configuration consistent with the module's constraints:
    # image size divisible by 2**len(kernels); len(enc)==len(dec).
    image_shape = (1, 16, 16)
    encoder_kernels = [4, 8]
    decoder_kernels = [8, 4]
    n_z, n_label, fc_layers, hidden = 8, 2, 2, 32
    batch = 2

    key = jax.random.PRNGKey(0)
    kp, kx, kl, ke = jax.random.split(key, 4)

    params, shapes = make_params(kp, image_shape, encoder_kernels, decoder_kernels,
                                 n_z, n_label, fc_layers, hidden)

    x = jax.random.normal(kx, (batch,) + image_shape, jnp.float32)
    lab = jax.nn.one_hot(jax.random.randint(kl, (batch,), 0, n_label), n_label,
                         dtype=jnp.float32)
    eps = jax.random.normal(ke, (batch, n_z), jnp.float32)  # randn_like(mean)

    out, mean, log_sigma_sq = cvae_forward(params, x, lab, eps,
                                           n_z=n_z, shapes=shapes)
    jax.block_until_ready((out, mean, log_sigma_sq))

    assert out.shape == (batch,) + image_shape, out.shape
    assert mean.shape == (batch, n_z)
    assert log_sigma_sq.shape == (batch, n_z)
    assert bool(jnp.all(jnp.isfinite(out)))
    assert bool(jnp.all((out > -1e-2) & (out < 1.0 + 1e-2)))   # sigmoid range
    print("KERNEL_OK")
</pallas_src>

<mosaic_0001>
module attributes {stable_mosaic.version = 11 : i64} {
  func.func @_matmul_cm_kernel(%arg0: i32, %arg1: memref<4x9xbf16, #tpu.memory_space<vmem>>, %arg2: memref<9x128xbf16, #tpu.memory_space<vmem>>, %arg3: memref<4x1xf32, #tpu.memory_space<vmem>>, %arg4: memref<4x128xbf16, #tpu.memory_space<vmem>>) attributes {dimension_semantics = [#tpu.dimension_semantics<parallel>], iteration_bounds = array<i64: 1>, scalar_prefetch = 0 : i64, scratch_operands = 0 : i64, tpu.core_type = #tpu.core_type<tc>, window_params = [{pipeline_mode = #tpu.pipeline_mode<synchronous>, transform_indices = @transform_0, window_bounds = array<i64: 4, 9>}, {transform_indices = @transform_1, window_bounds = array<i64: 9, 128>}, {pipeline_mode = #tpu.pipeline_mode<synchronous>, transform_indices = @transform_2, window_bounds = array<i64: 4, 1>}, {transform_indices = @transform_3, window_bounds = array<i64: 4, 128>}]} {
    %c0 = arith.constant 0 : index
    %c0_0 = arith.constant 0 : index
    %0 = vector.load %arg1[%c0, %c0_0] : memref<4x9xbf16, #tpu.memory_space<vmem>>, vector<4x9xbf16>
    %c0_1 = arith.constant 0 : index
    %c0_2 = arith.constant 0 : index
    %1 = vector.load %arg2[%c0_1, %c0_2] : memref<9x128xbf16, #tpu.memory_space<vmem>>, vector<9x128xbf16>
    %cst = arith.constant dense<0.000000e+00> : vector<4x128xf32>
    %2 = tpu.matmul %0, %1, %cst {dimension_numbers = #tpu.dot_dimension_numbers<[1], [0], [0], [1], [0, 0, 1, 1], [], []>} : vector<4x9xbf16>, vector<9x128xbf16>, vector<4x128xf32> -> vector<4x128xf32>
    %c0_3 = arith.constant 0 : index
    %c0_4 = arith.constant 0 : index
    %3 = vector.load %arg3[%c0_3, %c0_4] : memref<4x1xf32, #tpu.memory_space<vmem>>, vector<4x1xf32>
    %4 = vector.broadcast %3 : vector<4x1xf32> to vector<4x128xf32>
    %5 = arith.addf %2, %4 : vector<4x128xf32>
    %cst_5 = arith.constant 0.000000e+00 : f32
    %6 = vector.broadcast %cst_5 : f32 to vector<4x128xf32>
    %7 = arith.maximumf %5, %6 : vector<4x128xf32>
    %8 = arith.truncf %7 : vector<4x128xf32> to vector<4x128xbf16>
    %c0_6 = arith.constant 0 : index
    %c0_7 = arith.constant 0 : index
    %9 = vector.load %arg4[%c0_6, %c0_7] : memref<4x128xbf16, #tpu.memory_space<vmem>>, vector<4x128xbf16>
    tpu.vector_store %arg4[%c0_6, %c0_7], %8 {strides = array<i32>} : memref<4x128xbf16, #tpu.memory_space<vmem>>, vector<4x128xbf16>,
    return
  }
  func.func @transform_0(%arg0: i32) -> (i32, i32) {
    %c0_i32 = arith.constant 0 : i32
    %c0_i32_0 = arith.constant 0 : i32
    %c0_i32_1 = arith.constant 0 : i32
    return %c0_i32, %c0_i32_0 : i32, i32
  }
  func.func @transform_1(%arg0: i32) -> (i32, i32) {
    %c0_i32 = arith.constant 0 : i32
    %c0_i32_0 = arith.constant 0 : i32
    return %c0_i32, %arg0 : i32, i32
  }
  func.func @transform_2(%arg0: i32) -> (i32, i32) {
    %c0_i32 = arith.constant 0 : i32
    %c0_i32_0 = arith.constant 0 : i32
    %c0_i32_1 = arith.constant 0 : i32
    return %c0_i32, %c0_i32_0 : i32, i32
  }
  func.func @transform_3(%arg0: i32) -> (i32, i32) {
    %c0_i32 = arith.constant 0 : i32
    %c0_i32_0 = arith.constant 0 : i32
    return %c0_i32, %arg0 : i32, i32
  }
}

module attributes {stable_mosaic.version = 11 : i64} {
  func.func @_matmul_cm_kernel(%arg0: i32, %arg1: memref<8x36xbf16, #tpu.memory_space<vmem>>, %arg2: memref<36x32xbf16, #tpu.memory_space<vmem>>, %arg3: memref<8x1xf32, #tpu.memory_space<vmem>>, %arg4: memref<8x32xbf16, #tpu.memory_space<vmem>>) attributes {dimension_semantics = [#tpu.dimension_semantics<parallel>], iteration_bounds = array<i64: 1>, scalar_prefetch = 0 : i64, scratch_operands = 0 : i64, tpu.core_type = #tpu.core_type<tc>, window_params = [{pipeline_mode = #tpu.pipeline_mode<synchronous>, transform_indices = @transform_0, window_bounds = array<i64: 8, 36>}, {transform_indices = @transform_1, window_bounds = array<i64: 36, 32>}, {pipeline_mode = #tpu.pipeline_mode<synchronous>, transform_indices = @transform_2, window_bounds = array<i64: 8, 1>}, {transform_indices = @transform_3, window_bounds = array<i64: 8, 32>}]} {
    %c0 = arith.constant 0 : index
    %c0_0 = arith.constant 0 : index
    %0 = vector.load %arg1[%c0, %c0_0] : memref<8x36xbf16, #tpu.memory_space<vmem>>, vector<8x36xbf16>
    %c0_1 = arith.constant 0 : index
    %c0_2 = arith.constant 0 : index
    %1 = vector.load %arg2[%c0_1, %c0_2] : memref<36x32xbf16, #tpu.memory_space<vmem>>, vector<36x32xbf16>
    %cst = arith.constant dense<0.000000e+00> : vector<8x32xf32>
    %2 = tpu.matmul %0, %1, %cst {dimension_numbers = #tpu.dot_dimension_numbers<[1], [0], [0], [1], [0, 0, 1, 1], [], []>} : vector<8x36xbf16>, vector<36x32xbf16>, vector<8x32xf32> -> vector<8x32xf32>
    %c0_3 = arith.constant 0 : index
    %c0_4 = arith.constant 0 : index
    %3 = vector.load %arg3[%c0_3, %c0_4] : memref<8x1xf32, #tpu.memory_space<vmem>>, vector<8x1xf32>
    %4 = vector.broadcast %3 : vector<8x1xf32> to vector<8x32xf32>
    %5 = arith.addf %2, %4 : vector<8x32xf32>
    %cst_5 = arith.constant 0.000000e+00 : f32
    %6 = vector.broadcast %cst_5 : f32 to vector<8x32xf32>
    %7 = arith.maximumf %5, %6 : vector<8x32xf32>
    %8 = arith.truncf %7 : vector<8x32xf32> to vector<8x32xbf16>
    %c0_6 = arith.constant 0 : index
    %c0_7 = arith.constant 0 : index
    %9 = vector.load %arg4[%c0_6, %c0_7] : memref<8x32xbf16, #tpu.memory_space<vmem>>, vector<8x32xbf16>
    tpu.vector_store %arg4[%c0_6, %c0_7], %8 {strides = array<i32>} : memref<8x32xbf16, #tpu.memory_space<vmem>>, vector<8x32xbf16>,
    return
  }
  func.func @transform_0(%arg0: i32) -> (i32, i32) {
    %c0_i32 = arith.constant 0 : i32
    %c0_i32_0 = arith.constant 0 : i32
    %c0_i32_1 = arith.constant 0 : i32
    return %c0_i32, %c0_i32_0 : i32, i32
  }
  func.func @transform_1(%arg0: i32) -> (i32, i32) {
    %c0_i32 = arith.constant 0 : i32
    %c0_i32_0 = arith.constant 0 : i32
    return %c0_i32, %arg0 : i32, i32
  }
  func.func @transform_2(%arg0: i32) -> (i32, i32) {
    %c0_i32 = arith.constant 0 : i32
    %c0_i32_0 = arith.constant 0 : i32
    %c0_i32_1 = arith.constant 0 : i32
    return %c0_i32, %c0_i32_0 : i32, i32
  }
  func.func @transform_3(%arg0: i32) -> (i32, i32) {
    %c0_i32 = arith.constant 0 : i32
    %c0_i32_0 = arith.constant 0 : i32
    return %c0_i32, %arg0 : i32, i32
  }
}

module attributes {stable_mosaic.version = 11 : i64} {
  func.func @kernel(%arg0: i32, %arg1: memref<2x128xbf16, #tpu.memory_space<vmem>>, %arg2: memref<2x8xf32, #tpu.memory_space<vmem>>, %arg3: memref<2x2xf32, #tpu.memory_space<vmem>>, %arg4: memref<128x32xbf16, #tpu.memory_space<vmem>>, %arg5: memref<1x32xf32, #tpu.memory_space<vmem>>, %arg6: memref<32x16xbf16, #tpu.memory_space<vmem>>, %arg7: memref<1x16xf32, #tpu.memory_space<vmem>>, %arg8: memref<10x32xbf16, #tpu.memory_space<vmem>>, %arg9: memref<1x32xf32, #tpu.memory_space<vmem>>, %arg10: memref<32x128xbf16, #tpu.memory_space<vmem>>, %arg11: memref<1x128xf32, #tpu.memory_space<vmem>>, %arg12: memref<2x8xf32, #tpu.memory_space<vmem>>, %arg13: memref<2x8xf32, #tpu.memory_space<vmem>>, %arg14: memref<2x128xbf16, #tpu.memory_space<vmem>>) attributes {dimension_semantics = [#tpu.dimension_semantics<arbitrary>], iteration_bounds = array<i64: 1>, scalar_prefetch = 0 : i64, scratch_operands = 0 : i64, tpu.core_type = #tpu.core_type<tc>, window_params = [{pipeline_mode = #tpu.pipeline_mode<synchronous>, transform_indices = @transform_0, window_bounds = array<i64: 2, 128>}, {pipeline_mode = #tpu.pipeline_mode<synchronous>, transform_indices = @transform_1, window_bounds = array<i64: 2, 8>}, {pipeline_mode = #tpu.pipeline_mode<synchronous>, transform_indices = @transform_2, window_bounds = array<i64: 2, 2>}, {pipeline_mode = #tpu.pipeline_mode<synchronous>, transform_indices = @transform_3, window_bounds = array<i64: 128, 32>}, {pipeline_mode = #tpu.pipeline_mode<synchronous>, transform_indices = @transform_4, window_bounds = array<i64: 1, 32>}, {pipeline_mode = #tpu.pipeline_mode<synchronous>, transform_indices = @transform_5, window_bounds = array<i64: 32, 16>}, {pipeline_mode = #tpu.pipeline_mode<synchronous>, transform_indices = @transform_6, window_bounds = array<i64: 1, 16>}, {pipeline_mode = #tpu.pipeline_mode<synchronous>, transform_indices = @transform_7, window_bounds = array<i64: 10, 32>}, {pipeline_mode = #tpu.pipeline_mode<synchronous>, transform_indices = @transform_8, window_bounds = array<i64: 1, 32>}, {pipeline_mode = #tpu.pipeline_mode<synchronous>, transform_indices = @transform_9, window_bounds = array<i64: 32, 128>}, {pipeline_mode = #tpu.pipeline_mode<synchronous>, transform_indices = @transform_10, window_bounds = array<i64: 1, 128>}, {pipeline_mode = #tpu.pipeline_mode<synchronous>, transform_indices = @transform_11, window_bounds = array<i64: 2, 8>}, {pipeline_mode = #tpu.pipeline_mode<synchronous>, transform_indices = @transform_12, window_bounds = array<i64: 2, 8>}, {pipeline_mode = #tpu.pipeline_mode<synchronous>, transform_indices = @transform_13, window_bounds = array<i64: 2, 128>}]} {
    %c0 = arith.constant 0 : index
    %c0_0 = arith.constant 0 : index
    %0 = vector.load %arg1[%c0, %c0_0] : memref<2x128xbf16, #tpu.memory_space<vmem>>, vector<2x128xbf16>
    %c0_1 = arith.constant 0 : index
    %c0_2 = arith.constant 0 : index
    %1 = vector.load %arg4[%c0_1, %c0_2] : memref<128x32xbf16, #tpu.memory_space<vmem>>, vector<128x32xbf16>
    %cst = arith.constant dense<0.000000e+00> : vector<2x32xf32>
    %2 = tpu.matmul %0, %1, %cst {dimension_numbers = #tpu.dot_dimension_numbers<[1], [0], [0], [1], [0, 0, 1, 1], [], []>} : vector<2x128xbf16>, vector<128x32xbf16>, vector<2x32xf32> -> vector<2x32xf32>
    %c0_3 = arith.constant 0 : index
    %c0_4 = arith.constant 0 : index
    %3 = vector.load %arg5[%c0_3, %c0_4] : memref<1x32xf32, #tpu.memory_space<vmem>>, vector<1x32xf32>
    %4 = vector.broadcast %3 : vector<1x32xf32> to vector<2x32xf32>
    %5 = arith.addf %2, %4 : vector<2x32xf32>
    %cst_5 = arith.constant 0.000000e+00 : f32
    %6 = vector.broadcast %cst_5 : f32 to vector<2x32xf32>
    %7 = arith.maximumf %5, %6 : vector<2x32xf32>
    %8 = arith.truncf %7 : vector<2x32xf32> to vector<2x32xbf16>
    %c0_6 = arith.constant 0 : index
    %c0_7 = arith.constant 0 : index
    %9 = vector.load %arg6[%c0_6, %c0_7] : memref<32x16xbf16, #tpu.memory_space<vmem>>, vector<32x16xbf16>
    %cst_8 = arith.constant dense<0.000000e+00> : vector<2x16xf32>
    %10 = tpu.matmul %8, %9, %cst_8 {dimension_numbers = #tpu.dot_dimension_numbers<[1], [0], [0], [1], [0, 0, 1, 1], [], []>} : vector<2x32xbf16>, vector<32x16xbf16>, vector<2x16xf32> -> vector<2x16xf32>
    %c0_9 = arith.constant 0 : index
    %c0_10 = arith.constant 0 : index
    %11 = vector.load %arg7[%c0_9, %c0_10] : memref<1x16xf32, #tpu.memory_space<vmem>>, vector<1x16xf32>
    %12 = vector.broadcast %11 : vector<1x16xf32> to vector<2x16xf32>
    %13 = arith.addf %10, %12 : vector<2x16xf32>
    %14 = vector.extract_strided_slice %13 {offsets = [0, 0], sizes = [2, 8], strides = [1, 1]} : vector<2x16xf32> to vector<2x8xf32>
    %15 = vector.extract_strided_slice %13 {offsets = [0, 8], sizes = [2, 8], strides = [1, 1]} : vector<2x16xf32> to vector<2x8xf32>
    %c0_11 = arith.constant 0 : index
    %c0_12 = arith.constant 0 : index
    %16 = vector.load %arg12[%c0_11, %c0_12] : memref<2x8xf32, #tpu.memory_space<vmem>>, vector<2x8xf32>
    tpu.vector_store %arg12[%c0_11, %c0_12], %14 {strides = array<i32>} : memref<2x8xf32, #tpu.memory_space<vmem>>, vector<2x8xf32>,
    %c0_13 = arith.constant 0 : index
    %c0_14 = arith.constant 0 : index
    %17 = vector.load %arg13[%c0_13, %c0_14] : memref<2x8xf32, #tpu.memory_space<vmem>>, vector<2x8xf32>
    tpu.vector_store %arg13[%c0_13, %c0_14], %15 {strides = array<i32>} : memref<2x8xf32, #tpu.memory_space<vmem>>, vector<2x8xf32>,
    %c0_15 = arith.constant 0 : index
    %c0_16 = arith.constant 0 : index
    %18 = vector.load %arg2[%c0_15, %c0_16] : memref<2x8xf32, #tpu.memory_space<vmem>>, vector<2x8xf32>
    %cst_17 = arith.constant 5.000000e-01 : f32
    %19 = vector.broadcast %cst_17 : f32 to vector<2x8xf32>
    %20 = arith.mulf %19, %15 : vector<2x8xf32>
    %21 = math.exp %20 : vector<2x8xf32>
    %22 = arith.mulf %18, %21 : vector<2x8xf32>
    %23 = arith.addf %14, %22 : vector<2x8xf32>
    %c0_18 = arith.constant 0 : index
    %c0_19 = arith.constant 0 : index
    %24 = vector.load %arg8[%c0_18, %c0_19] : memref<10x32xbf16, #tpu.memory_space<vmem>>, vector<10x32xbf16>
    %25 = arith.extf %24 : vector<10x32xbf16> to vector<10x32xf32>
    %26 = vector.extract_strided_slice %25 {offsets = [0, 0], sizes = [8, 32], strides = [1, 1]} : vector<10x32xf32> to vector<8x32xf32>
    %cst_20 = arith.constant dense<0.000000e+00> : vector<2x32xf32>
    %27 = tpu.matmul %23, %26, %cst_20 {dimension_numbers = #tpu.dot_dimension_numbers<[1], [0], [0], [1], [0, 0, 1, 1], [], []>} : vector<2x8xf32>, vector<8x32xf32>, vector<2x32xf32> -> vector<2x32xf32>
    %c0_21 = arith.constant 0 : index
    %c0_22 = arith.constant 0 : index
    %28 = vector.load %arg3[%c0_21, %c0_22] : memref<2x2xf32, #tpu.memory_space<vmem>>, vector<2x2xf32>
    %29 = vector.extract_strided_slice %25 {offsets = [8, 0], sizes = [2, 32], strides = [1, 1]} : vector<10x32xf32> to vector<2x32xf32>
    %cst_23 = arith.constant dense<0.000000e+00> : vector<2x32xf32>
    %30 = tpu.matmul %28, %29, %cst_23 {dimension_numbers = #tpu.dot_dimension_numbers<[1], [0], [0], [1], [0, 0, 1, 1], [], []>} : vector<2x2xf32>, vector<2x32xf32>, vector<2x32xf32> -> vector<2x32xf32>
    %31 = arith.addf %27, %30 : vector<2x32xf32>
    %c0_24 = arith.constant 0 : index
    %c0_25 = arith.constant 0 : index
    %32 = vector.load %arg9[%c0_24, %c0_25] : memref<1x32xf32, #tpu.memory_space<vmem>>, vector<1x32xf32>
    %33 = vector.broadcast %32 : vector<1x32xf32> to vector<2x32xf32>
    %34 = arith.addf %31, %33 : vector<2x32xf32>
    %cst_26 = arith.constant 0.000000e+00 : f32
    %35 = vector.broadcast %cst_26 : f32 to vector<2x32xf32>
    %36 = arith.maximumf %34, %35 : vector<2x32xf32>
    %37 = arith.truncf %36 : vector<2x32xf32> to vector<2x32xbf16>
    %c0_27 = arith.constant 0 : index
    %c0_28 = arith.constant 0 : index
    %38 = vector.load %arg10[%c0_27, %c0_28] : memref<32x128xbf16, #tpu.memory_space<vmem>>, vector<32x128xbf16>
    %cst_29 = arith.constant dense<0.000000e+00> : vector<2x128xf32>
    %39 = tpu.matmul %37, %38, %cst_29 {dimension_numbers = #tpu.dot_dimension_numbers<[1], [0], [0], [1], [0, 0, 1, 1], [], []>} : vector<2x32xbf16>, vector<32x128xbf16>, vector<2x128xf32> -> vector<2x128xf32>
    %c0_30 = arith.constant 0 : index
    %c0_31 = arith.constant 0 : index
    %40 = vector.load %arg11[%c0_30, %c0_31] : memref<1x128xf32, #tpu.memory_space<vmem>>, vector<1x128xf32>
    %41 = vector.broadcast %40 : vector<1x128xf32> to vector<2x128xf32>
    %42 = arith.addf %39, %41 : vector<2x128xf32>
    %cst_32 = arith.constant 0.000000e+00 : f32
    %43 = vector.broadcast %cst_32 : f32 to vector<2x128xf32>
    %44 = arith.maximumf %42, %43 : vector<2x128xf32>
    %45 = arith.truncf %44 : vector<2x128xf32> to vector<2x128xbf16>
    %c0_33 = arith.constant 0 : index
    %c0_34 = arith.constant 0 : index
    %46 = vector.load %arg14[%c0_33, %c0_34] : memref<2x128xbf16, #tpu.memory_space<vmem>>, vector<2x128xbf16>
    tpu.vector_store %arg14[%c0_33, %c0_34], %45 {strides = array<i32>} : memref<2x128xbf16, #tpu.memory_space<vmem>>, vector<2x128xbf16>,
    return
  }
  func.func @transform_0(%arg0: i32) -> (i32, i32) {
    %c0_i32 = arith.constant 0 : i32
    %c0_i32_0 = arith.constant 0 : i32
    %c0_i32_1 = arith.constant 0 : i32
    return %c0_i32, %c0_i32_0 : i32, i32
  }
  func.func @transform_1(%arg0: i32) -> (i32, i32) {
    %c0_i32 = arith.constant 0 : i32
    %c0_i32_0 = arith.constant 0 : i32
    %c0_i32_1 = arith.constant 0 : i32
    return %c0_i32, %c0_i32_0 : i32, i32
  }
  func.func @transform_2(%arg0: i32) -> (i32, i32) {
    %c0_i32 = arith.constant 0 : i32
    %c0_i32_0 = arith.constant 0 : i32
    %c0_i32_1 = arith.constant 0 : i32
    return %c0_i32, %c0_i32_0 : i32, i32
  }
  func.func @transform_3(%arg0: i32) -> (i32, i32) {
    %c0_i32 = arith.constant 0 : i32
    %c0_i32_0 = arith.constant 0 : i32
    %c0_i32_1 = arith.constant 0 : i32
    return %c0_i32, %c0_i32_0 : i32, i32
  }
  func.func @transform_4(%arg0: i32) -> (i32, i32) {
    %c0_i32 = arith.constant 0 : i32
    %c0_i32_0 = arith.constant 0 : i32
    %c0_i32_1 = arith.constant 0 : i32
    return %c0_i32, %c0_i32_0 : i32, i32
  }
  func.func @transform_5(%arg0: i32) -> (i32, i32) {
    %c0_i32 = arith.constant 0 : i32
    %c0_i32_0 = arith.constant 0 : i32
    %c0_i32_1 = arith.constant 0 : i32
    return %c0_i32, %c0_i32_0 : i32, i32
  }
  func.func @transform_6(%arg0: i32) -> (i32, i32) {
    %c0_i32 = arith.constant 0 : i32
    %c0_i32_0 = arith.constant 0 : i32
    %c0_i32_1 = arith.constant 0 : i32
    return %c0_i32, %c0_i32_0 : i32, i32
  }
  func.func @transform_7(%arg0: i32) -> (i32, i32) {
    %c0_i32 = arith.constant 0 : i32
    %c0_i32_0 = arith.constant 0 : i32
    %c0_i32_1 = arith.constant 0 : i32
    return %c0_i32, %c0_i32_0 : i32, i32
  }
  func.func @transform_8(%arg0: i32) -> (i32, i32) {
    %c0_i32 = arith.constant 0 : i32
    %c0_i32_0 = arith.constant 0 : i32
    %c0_i32_1 = arith.constant 0 : i32
    return %c0_i32, %c0_i32_0 : i32, i32
  }
  func.func @transform_9(%arg0: i32) -> (i32, i32) {
    %c0_i32 = arith.constant 0 : i32
    %c0_i32_0 = arith.constant 0 : i32
    %c0_i32_1 = arith.constant 0 : i32
    return %c0_i32, %c0_i32_0 : i32, i32
  }
  func.func @transform_10(%arg0: i32) -> (i32, i32) {
    %c0_i32 = arith.constant 0 : i32
    %c0_i32_0 = arith.constant 0 : i32
    %c0_i32_1 = arith.constant 0 : i32
    return %c0_i32, %c0_i32_0 : i32, i32
  }
  func.func @transform_11(%arg0: i32) -> (i32, i32) {
    %c0_i32 = arith.constant 0 : i32
    %c0_i32_0 = arith.constant 0 : i32
    %c0_i32_1 = arith.constant 0 : i32
    return %c0_i32, %c0_i32_0 : i32, i32
  }
  func.func @transform_12(%arg0: i32) -> (i32, i32) {
    %c0_i32 = arith.constant 0 : i32
    %c0_i32_0 = arith.constant 0 : i32
    %c0_i32_1 = arith.constant 0 : i32
    return %c0_i32, %c0_i32_0 : i32, i32
  }
  func.func @transform_13(%arg0: i32) -> (i32, i32) {
    %c0_i32 = arith.constant 0 : i32
    %c0_i32_0 = arith.constant 0 : i32
    %c0_i32_1 = arith.constant 0 : i32
    return %c0_i32, %c0_i32_0 : i32, i32
  }
}

module attributes {stable_mosaic.version = 11 : i64} {
  func.func @_matmul_cm_kernel(%arg0: i32, %arg1: memref<16x8xbf16, #tpu.memory_space<vmem>>, %arg2: memref<8x32xbf16, #tpu.memory_space<vmem>>, %arg3: memref<16x1xf32, #tpu.memory_space<vmem>>, %arg4: memref<16x32xbf16, #tpu.memory_space<vmem>>) attributes {dimension_semantics = [#tpu.dimension_semantics<parallel>], iteration_bounds = array<i64: 1>, scalar_prefetch = 0 : i64, scratch_operands = 0 : i64, tpu.core_type = #tpu.core_type<tc>, window_params = [{pipeline_mode = #tpu.pipeline_mode<synchronous>, transform_indices = @transform_0, window_bounds = array<i64: 16, 8>}, {transform_indices = @transform_1, window_bounds = array<i64: 8, 32>}, {pipeline_mode = #tpu.pipeline_mode<synchronous>, transform_indices = @transform_2, window_bounds = array<i64: 16, 1>}, {transform_indices = @transform_3, window_bounds = array<i64: 16, 32>}]} {
    %c0 = arith.constant 0 : index
    %c0_0 = arith.constant 0 : index
    %0 = vector.load %arg1[%c0, %c0_0] : memref<16x8xbf16, #tpu.memory_space<vmem>>, vector<16x8xbf16>
    %c0_1 = arith.constant 0 : index
    %c0_2 = arith.constant 0 : index
    %1 = vector.load %arg2[%c0_1, %c0_2] : memref<8x32xbf16, #tpu.memory_space<vmem>>, vector<8x32xbf16>
    %cst = arith.constant dense<0.000000e+00> : vector<16x32xf32>
    %2 = tpu.matmul %0, %1, %cst {dimension_numbers = #tpu.dot_dimension_numbers<[1], [0], [0], [1], [0, 0, 1, 1], [], []>} : vector<16x8xbf16>, vector<8x32xbf16>, vector<16x32xf32> -> vector<16x32xf32>
    %c0_3 = arith.constant 0 : index
    %c0_4 = arith.constant 0 : index
    %3 = vector.load %arg3[%c0_3, %c0_4] : memref<16x1xf32, #tpu.memory_space<vmem>>, vector<16x1xf32>
    %4 = vector.broadcast %3 : vector<16x1xf32> to vector<16x32xf32>
    %5 = arith.addf %2, %4 : vector<16x32xf32>
    %cst_5 = arith.constant 0.000000e+00 : f32
    %6 = vector.broadcast %cst_5 : f32 to vector<16x32xf32>
    %7 = arith.maximumf %5, %6 : vector<16x32xf32>
    %8 = arith.truncf %7 : vector<16x32xf32> to vector<16x32xbf16>
    %c0_6 = arith.constant 0 : index
    %c0_7 = arith.constant 0 : index
    %9 = vector.load %arg4[%c0_6, %c0_7] : memref<16x32xbf16, #tpu.memory_space<vmem>>, vector<16x32xbf16>
    tpu.vector_store %arg4[%c0_6, %c0_7], %8 {strides = array<i32>} : memref<16x32xbf16, #tpu.memory_space<vmem>>, vector<16x32xbf16>,
    return
  }
  func.func @transform_0(%arg0: i32) -> (i32, i32) {
    %c0_i32 = arith.constant 0 : i32
    %c0_i32_0 = arith.constant 0 : i32
    %c0_i32_1 = arith.constant 0 : i32
    return %c0_i32, %c0_i32_0 : i32, i32
  }
  func.func @transform_1(%arg0: i32) -> (i32, i32) {
    %c0_i32 = arith.constant 0 : i32
    %c0_i32_0 = arith.constant 0 : i32
    return %c0_i32, %arg0 : i32, i32
  }
  func.func @transform_2(%arg0: i32) -> (i32, i32) {
    %c0_i32 = arith.constant 0 : i32
    %c0_i32_0 = arith.constant 0 : i32
    %c0_i32_1 = arith.constant 0 : i32
    return %c0_i32, %c0_i32_0 : i32, i32
  }
  func.func @transform_3(%arg0: i32) -> (i32, i32) {
    %c0_i32 = arith.constant 0 : i32
    %c0_i32_0 = arith.constant 0 : i32
    return %c0_i32, %arg0 : i32, i32
  }
}

module attributes {stable_mosaic.version = 11 : i64} {
  func.func @_matmul_cm_kernel(%arg0: i32, %arg1: memref<4x4xbf16, #tpu.memory_space<vmem>>, %arg2: memref<4x128xbf16, #tpu.memory_space<vmem>>, %arg3: memref<4x1xf32, #tpu.memory_space<vmem>>, %arg4: memref<4x128xf32, #tpu.memory_space<vmem>>) attributes {dimension_semantics = [#tpu.dimension_semantics<parallel>], iteration_bounds = array<i64: 1>, scalar_prefetch = 0 : i64, scratch_operands = 0 : i64, tpu.core_type = #tpu.core_type<tc>, window_params = [{pipeline_mode = #tpu.pipeline_mode<synchronous>, transform_indices = @transform_0, window_bounds = array<i64: 4, 4>}, {transform_indices = @transform_1, window_bounds = array<i64: 4, 128>}, {pipeline_mode = #tpu.pipeline_mode<synchronous>, transform_indices = @transform_2, window_bounds = array<i64: 4, 1>}, {transform_indices = @transform_3, window_bounds = array<i64: 4, 128>}]} {
    %c0 = arith.constant 0 : index
    %c0_0 = arith.constant 0 : index
    %0 = vector.load %arg1[%c0, %c0_0] : memref<4x4xbf16, #tpu.memory_space<vmem>>, vector<4x4xbf16>
    %c0_1 = arith.constant 0 : index
    %c0_2 = arith.constant 0 : index
    %1 = vector.load %arg2[%c0_1, %c0_2] : memref<4x128xbf16, #tpu.memory_space<vmem>>, vector<4x128xbf16>
    %cst = arith.constant dense<0.000000e+00> : vector<4x128xf32>
    %2 = tpu.matmul %0, %1, %cst {dimension_numbers = #tpu.dot_dimension_numbers<[1], [0], [0], [1], [0, 0, 1, 1], [], []>} : vector<4x4xbf16>, vector<4x128xbf16>, vector<4x128xf32> -> vector<4x128xf32>
    %c0_3 = arith.constant 0 : index
    %c0_4 = arith.constant 0 : index
    %3 = vector.load %arg3[%c0_3, %c0_4] : memref<4x1xf32, #tpu.memory_space<vmem>>, vector<4x1xf32>
    %4 = vector.broadcast %3 : vector<4x1xf32> to vector<4x128xf32>
    %5 = arith.addf %2, %4 : vector<4x128xf32>
    %cst_5 = arith.constant 0.000000e+00 : f32
    %6 = vector.broadcast %cst_5 : f32 to vector<4x128xf32>
    %7 = arith.subf %6, %5 : vector<4x128xf32>
    %8 = math.exp %7 : vector<4x128xf32>
    %cst_6 = arith.constant 1.000000e+00 : f32
    %9 = vector.broadcast %cst_6 : f32 to vector<4x128xf32>
    %10 = arith.addf %9, %8 : vector<4x128xf32>
    %11 = tpu.reciprocal %10 {approx = true} : vector<4x128xf32> -> vector<4x128xf32>
    %c0_7 = arith.constant 0 : index
    %c0_8 = arith.constant 0 : index
    %12 = vector.load %arg4[%c0_7, %c0_8] : memref<4x128xf32, #tpu.memory_space<vmem>>, vector<4x128xf32>
    tpu.vector_store %arg4[%c0_7, %c0_8], %11 {strides = array<i32>} : memref<4x128xf32, #tpu.memory_space<vmem>>, vector<4x128xf32>,
    return
  }
  func.func @transform_0(%arg0: i32) -> (i32, i32) {
    %c0_i32 = arith.constant 0 : i32
    %c0_i32_0 = arith.constant 0 : i32
    %c0_i32_1 = arith.constant 0 : i32
    return %c0_i32, %c0_i32_0 : i32, i32
  }
  func.func @transform_1(%arg0: i32) -> (i32, i32) {
    %c0_i32 = arith.constant 0 : i32
    %c0_i32_0 = arith.constant 0 : i32
    return %c0_i32, %arg0 : i32, i32
  }
  func.func @transform_2(%arg0: i32) -> (i32, i32) {
    %c0_i32 = arith.constant 0 : i32
    %c0_i32_0 = arith.constant 0 : i32
    %c0_i32_1 = arith.constant 0 : i32
    return %c0_i32, %c0_i32_0 : i32, i32
  }
  func.func @transform_3(%arg0: i32) -> (i32, i32) {
    %c0_i32 = arith.constant 0 : i32
    %c0_i32_0 = arith.constant 0 : i32
    return %c0_i32, %arg0 : i32, i32
  }
}

</mosaic_0001>

<llo_original>
// kernel: cvae_forward.5
$region0: #{cvae_forward.5}
  #allocation0 [shape = 'u32[]', space=smem, size = 0x4, offset = 0x4, fixed_abs, tag = 'smem constant byte address 0x4 - core index']
  #allocation1 [shape = 'u32[144,128]{1,0:T(1,128)}', space=vmem, size = 0x12000, scoped, tag = 'internal scratch']
  %s0 = inlined_call_operand.vmem [shape: bf16[4,9], index: 0, kind: input, shape index: {}]
  %s1 = inlined_call_operand.vmem [shape: bf16[9,128], index: 1, kind: input, shape index: {}]
  %s2 = inlined_call_operand.vmem [shape: f32[4,1], index: 2, kind: input, shape index: {}]
  %s3 = inlined_call_operand.vmem [shape: bf16[4,128], index: 3, kind: output, shape index: {}]
  %s4 = sld [smem:[#allocation0]]
  $region22: #{cvae_forward.5} parent=0
    _
  %s6 = ssub.s32 1, %s4
  %s7 = scalar_select 0, %s6, %s4
  // Predicated region
  $region2: #{cvae_forward.5} parent=0 // pred_check
    _
  $region3: #{cvae_forward.5} parent=0 // pred_check_branch
    %9 = sbr.rel (0) target = $region5
  $region4: #{cvae_forward.5} parent=0 // pred_region
    _
  $region5: #{cvae_forward.5} parent=0 // pred_fallthru
    _
  // Predicated region
  $region6: #{cvae_forward.5} parent=0 // pred_check
    _
  $region7: #{cvae_forward.5} parent=0 // pred_check_branch
    %11 = sbr.rel (0) target = $region9
  $region8: #{cvae_forward.5} parent=0 // pred_region
    _
  $region9: #{cvae_forward.5} parent=0 // pred_fallthru
    _
  // Predicated region
  $region10: #{cvae_forward.5} parent=0 // pred_check
    _
  $region11: #{cvae_forward.5} parent=0 // pred_check_branch
    %13 = sbr.rel (0) target = $region13
  $region12: #{cvae_forward.5} parent=0 // pred_region
    _
  $region13: #{cvae_forward.5} parent=0 // pred_fallthru
    _
  %v15 = vld [vmem:[%s0] sm:$0x3]
  %v16 = vld [vmem:[%s1] sm:$0xf]
  %v17 = vld [vmem:[%s1 + $0x4] sm:$0x1]
  %v18 = vld [vmem:[%s2] sm:$0xf]
  %20 = vset.pattern.permute.xlu0 0
  %21 = vperm.xlu0 %20, %v18
  %v22 = vpop.permute.xlu0 %21
  %v26 = vunpack.c.l.b16 %v16
  %v27 = vunpack.c.l.b16 %v17
  %v28 = vpack.c.b16 %v27, %v26
  %vm29 = vcmask 72704
  %v31 = vsel %vm29, %v15, 0
  %vm33 = vcmask 1043456
  %vm34 = vcmask 1044480
  %v35 = vsel %vm33, 4294967295, 65535
  %v36 = vsel %vm34, %v35, 0
  %v38 = vand.u32 %v28, %v36
  %40 = vmatprep.subr.bf16.mxu0 0
  %41 = vmatpush1.bf16.msra.mxu0 %v38
  %42 = vmatprep.subr.bf16.mxu0 0
  %43 = vmatpush1.bf16.msra.mxu0 0
  %44 = vmatprep.subr.bf16.mxu0 0
  %45 = vmatpush1.bf16.msra.mxu0 0
  %46 = vmatprep.subr.bf16.mxu0 0
  %47 = vmatpush1.bf16.msra.mxu0 0
  %48 = vmatprep.subr.bf16.mxu0 0
  %49 = vmatpush1.bf16.msra.mxu0 0
  %50 = vmatprep.subr.bf16.mxu0 0
  %51 = vmatpush1.bf16.msra.mxu0 0
  %52 = vmatprep.subr.bf16.mxu0 0
  %53 = vmatpush1.bf16.msra.mxu0 0
  %54 = vmatprep.subr.bf16.mxu0 0
  %55 = vmatpush1.bf16.msra.mxu0 0
  %56 = vmatprep.subr.bf16.mxu0 0
  %57 = vmatpush1.bf16.msra.mxu0 0
  %58 = vmatprep.subr.bf16.mxu0 0
  %59 = vmatpush1.bf16.msra.mxu0 0
  %60 = vmatprep.subr.bf16.mxu0 0
  %61 = vmatpush1.bf16.msra.mxu0 0
  %62 = vmatprep.subr.bf16.mxu0 0
  %63 = vmatpush1.bf16.msra.mxu0 0
  %64 = vmatprep.subr.bf16.mxu0 0
  %65 = vmatpush1.bf16.msra.mxu0 0
  %66 = vmatprep.subr.bf16.mxu0 0
  %67 = vmatpush1.bf16.msra.mxu0 0
  %68 = vmatprep.subr.bf16.mxu0 0
  %69 = vmatpush1.bf16.msra.mxu0 0
  %70 = vmatprep.subr.bf16.mxu0 0
  %71 = vmatpush1.bf16.msra.mxu0 0
  %72 = vmatprep.mubr.bf16.mxu0 0
  %73 = vmatmul.mubr.bf16.gmra.mrb[0].mxu0 %v31
  %v74 = vpop.f32.mrb[0].mxu0
  %v75 = vadd.f32 %v22, %v74
  %v76 = vpop.f32.mrb[0].mxu0
  %v77 = vpop.f32.mrb[0].mxu0
  %v78 = vpop.f32.mrb[0].mxu0
  %79 = vdwg.mxu0
  %v80 = vmax.f32 %v75, 0.0
  %v81 = vpack.c.bf16 %v80, %v80
  %82 = vst [vmem:[%s3] sm:$0x3] %v81
  // Predicated region
  $region14: #{cvae_forward.5} parent=0 // pred_check
    _
  $region15: #{cvae_forward.5} parent=0 // pred_check_branch
    %84 = sbr.rel (0) target = $region17
  $region16: #{cvae_forward.5} parent=0 // pred_region
    _
  $region17: #{cvae_forward.5} parent=0 // pred_fallthru
    _
  // Predicated region
  $region18: #{cvae_forward.5} parent=0 // pred_check
    _
  $region19: #{cvae_forward.5} parent=0 // pred_check_branch
    %86 = sbr.rel (0) target = $region21
  $region20: #{cvae_forward.5} parent=0 // pred_region
    _
  $region21: #{cvae_forward.5} parent=0 // pred_fallthru
    _

// kernel: cvae_forward.6
$region0: #{cvae_forward.6}
  #allocation0 [shape = 'u32[]', space=smem, size = 0x4, offset = 0x4, fixed_abs, tag = 'smem constant byte address 0x4 - core index']
  #allocation1 [shape = 'u32[144,128]{1,0:T(1,128)}', space=vmem, size = 0x12000, scoped, tag = 'internal scratch']
  %s0 = inlined_call_operand.vmem [shape: bf16[8,36], index: 0, kind: input, shape index: {}]
  %s1 = inlined_call_operand.vmem [shape: bf16[36,32], index: 1, kind: input, shape index: {}]
  %s2 = inlined_call_operand.vmem [shape: f32[8,1], index: 2, kind: input, shape index: {}]
  %s3 = inlined_call_operand.vmem [shape: bf16[8,32], index: 3, kind: output, shape index: {}]
  %s4 = sld [smem:[#allocation0]]
  $region22: #{cvae_forward.6} parent=0
    _
  %s6 = ssub.s32 1, %s4
  %s7 = scalar_select 0, %s6, %s4
  // Predicated region
  $region2: #{cvae_forward.6} parent=0 // pred_check
    _
  $region3: #{cvae_forward.6} parent=0 // pred_check_branch
    %9 = sbr.rel (0) target = $region5
  $region4: #{cvae_forward.6} parent=0 // pred_region
    _
  $region5: #{cvae_forward.6} parent=0 // pred_fallthru
    _
  // Predicated region
  $region6: #{cvae_forward.6} parent=0 // pred_check
    _
  $region7: #{cvae_forward.6} parent=0 // pred_check_branch
    %11 = sbr.rel (0) target = $region9
  $region8: #{cvae_forward.6} parent=0 // pred_region
    _
  $region9: #{cvae_forward.6} parent=0 // pred_fallthru
    _
  // Predicated region
  $region10: #{cvae_forward.6} parent=0 // pred_check
    _
  $region11: #{cvae_forward.6} parent=0 // pred_check_branch
    %13 = sbr.rel (0) target = $region13
  $region12: #{cvae_forward.6} parent=0 // pred_region
    _
  $region13: #{cvae_forward.6} parent=0 // pred_fallthru
    _
  %v15 = vld [vmem:[%s0] sm:$0xf]
  %v16 = vld [vmem:[%s1] sm:$0xf]
  %v17 = vld [vmem:[%s1 + $0x4] sm:$0xf]
  %v18 = vld [vmem:[%s1 + $0x8] sm:$0xf]
  %v19 = vld [vmem:[%s1 + $0xc] sm:$0xf]
  %v20 = vld [vmem:[%s1 + $0x10] sm:$0x3]
  %v21 = vld [vmem:[%s2] sm:$0xff]
  %23 = vset.pattern.permute.xlu0 0
  %24 = vperm.xlu0 %23, %v21
  %v25 = vpop.permute.xlu0 %24
  %v32 = vunpack.c.l.b16 %v16
  %v33 = vunpack.c.l.b16 %v17
  %v34 = vunpack.c.l.b16 %v18
  %v35 = vunpack.c.l.b16 %v19
  %v36 = vunpack.c.l.b16 %v20
  %v37 = vpack.c.b16 %v33, %v32
  %v38 = vpack.c.b16 %v35, %v34
  %v39 = vpack.c.b16 %v36, %v36
  %vm42 = vcmask 293888
  %v44 = vsel %vm42, %v15, 0
  %vm46 = vcmask 1041408
  %v48 = vsel %vm46, %v39, 0
  %50 = vmatprep.subr.bf16.mxu0 0
  %51 = vmatpush1.bf16.msra.mxu0 %v37
  %52 = vmatprep.subr.bf16.mxu0 0
  %53 = vmatpush1.bf16.msra.mxu0 %v38
  %54 = vmatprep.subr.bf16.mxu0 0
  %55 = vmatpush1.bf16.msra.mxu0 %v48
  %56 = vmatprep.subr.bf16.mxu0 0
  %57 = vmatpush1.bf16.msra.mxu0 0
  %58 = vmatprep.subr.bf16.mxu0 0
  %59 = vmatpush1.bf16.msra.mxu0 0
  %60 = vmatprep.subr.bf16.mxu0 0
  %61 = vmatpush1.bf16.msra.mxu0 0
  %62 = vmatprep.subr.bf16.mxu0 0
  %63 = vmatpush1.bf16.msra.mxu0 0
  %64 = vmatprep.subr.bf16.mxu0 0
  %65 = vmatpush1.bf16.msra.mxu0 0
  %66 = vmatprep.subr.bf16.mxu0 0
  %67 = vmatpush1.bf16.msra.mxu0 0
  %68 = vmatprep.subr.bf16.mxu0 0
  %69 = vmatpush1.bf16.msra.mxu0 0
  %70 = vmatprep.subr.bf16.mxu0 0
  %71 = vmatpush1.bf16.msra.mxu0 0
  %72 = vmatprep.subr.bf16.mxu0 0
  %73 = vmatpush1.bf16.msra.mxu0 0
  %74 = vmatprep.subr.bf16.mxu0 0
  %75 = vmatpush1.bf16.msra.mxu0 0
  %76 = vmatprep.subr.bf16.mxu0 0
  %77 = vmatpush1.bf16.msra.mxu0 0
  %78 = vmatprep.subr.bf16.mxu0 0
  %79 = vmatpush1.bf16.msra.mxu0 0
  %80 = vmatprep.subr.bf16.mxu0 0
  %81 = vmatpush1.bf16.msra.mxu0 0
  %82 = vmatprep.mubr.bf16.mxu0 0
  %83 = vmatmul.mubr.bf16.gmra.mrb[0].mxu0 %v44
  %v84 = vpop.f32.mrb[0].mxu0
  %v85 = vadd.f32 %v25, %v84
  %v86 = vpop.f32.mrb[0].mxu0
  %v87 = vpop.f32.mrb[0].mxu0
  %v88 = vpop.f32.mrb[0].mxu0
  %89 = vdwg.mxu0
  %v90 = vmax.f32 %v85, 0.0
  %v91 = vpack.c.bf16 %v90, %v90
  %vm92 = vcmask 257024
  %93 = vst.msk [vmem:[%s3] sm:$0xf] %vm92, %v91
  // Predicated region
  $region14: #{cvae_forward.6} parent=0 // pred_check
    _
  $region15: #{cvae_forward.6} parent=0 // pred_check_branch
    %95 = sbr.rel (0) target = $region17
  $region16: #{cvae_forward.6} parent=0 // pred_region
    _
  $region17: #{cvae_forward.6} parent=0 // pred_fallthru
    _
  // Predicated region
  $region18: #{cvae_forward.6} parent=0 // pred_check
    _
  $region19: #{cvae_forward.6} parent=0 // pred_check_branch
    %97 = sbr.rel (0) target = $region21
  $region20: #{cvae_forward.6} parent=0 // pred_region
    _
  $region21: #{cvae_forward.6} parent=0 // pred_fallthru
    _

// kernel: cvae_forward.8
$region0: #{cvae_forward.8}
  #allocation0 [shape = 'u32[]', space=smem, size = 0x4, offset = 0x4, fixed_abs, tag = 'smem constant byte address 0x4 - core index']
  #allocation1 [shape = 'u32[144,128]{1,0:T(1,128)}', space=vmem, size = 0x12000, scoped, tag = 'internal scratch']
  %s0 = inlined_call_operand.vmem [shape: bf16[16,8], index: 0, kind: input, shape index: {}]
  %s1 = inlined_call_operand.vmem [shape: bf16[8,32], index: 1, kind: input, shape index: {}]
  %s2 = inlined_call_operand.vmem [shape: f32[16,1], index: 2, kind: input, shape index: {}]
  %s3 = inlined_call_operand.vmem [shape: bf16[16,32], index: 3, kind: output, shape index: {}]
  %s4 = sld [smem:[#allocation0]]
  $region22: #{cvae_forward.8} parent=0
    _
  %s6 = ssub.s32 1, %s4
  %s7 = scalar_select 0, %s6, %s4
  // Predicated region
  $region2: #{cvae_forward.8} parent=0 // pred_check
    _
  $region3: #{cvae_forward.8} parent=0 // pred_check_branch
    %9 = sbr.rel (0) target = $region5
  $region4: #{cvae_forward.8} parent=0 // pred_region
    _
  $region5: #{cvae_forward.8} parent=0 // pred_fallthru
    _
  // Predicated region
  $region6: #{cvae_forward.8} parent=0 // pred_check
    _
  $region7: #{cvae_forward.8} parent=0 // pred_check_branch
    %11 = sbr.rel (0) target = $region9
  $region8: #{cvae_forward.8} parent=0 // pred_region
    _
  $region9: #{cvae_forward.8} parent=0 // pred_fallthru
    _
  // Predicated region
  $region10: #{cvae_forward.8} parent=0 // pred_check
    _
  $region11: #{cvae_forward.8} parent=0 // pred_check_branch
    %13 = sbr.rel (0) target = $region13
  $region12: #{cvae_forward.8} parent=0 // pred_region
    _
  $region13: #{cvae_forward.8} parent=0 // pred_fallthru
    _
  %v15 = vld [vmem:[%s0] sm:$0xf]
  %v16 = vld [vmem:[%s0 + $0x4] sm:$0xf]
  %v17 = vld [vmem:[%s1] sm:$0xf]
  %v18 = vld [vmem:[%s2] sm:$0xff]
  %v19 = vld [vmem:[%s2 + $0x8] sm:$0xff]
  %21 = vset.pattern.permute.xlu0 0
  %22 = vperm.xlu0 %21, %v18
  %v23 = vpop.permute.xlu0 %22
  %26 = vset.pattern.permute.xlu0 0
  %27 = vperm.xlu0 %26, %v19
  %v28 = vpop.permute.xlu0 %27
  %v32 = vunpack.c.l.b16 %v15
  %v33 = vunpack.c.l.b16 %v16
  %v34 = vpack.c.b16 %v33, %v32
  %vm35 = vcmask 64512
  %v37 = vsel %vm35, %v34, 0
  %vm39 = vcmask 1043456
  %v41 = vsel %vm39, %v17, 0
  %43 = vmatprep.subr.bf16.mxu0 0
  %44 = vmatpush1.bf16.msra.mxu0 %v41
  %45 = vmatprep.subr.bf16.mxu0 0
  %46 = vmatpush1.bf16.msra.mxu0 0
  %47 = vmatprep.subr.bf16.mxu0 0
  %48 = vmatpush1.bf16.msra.mxu0 0
  %49 = vmatprep.subr.bf16.mxu0 0
  %50 = vmatpush1.bf16.msra.mxu0 0
  %51 = vmatprep.subr.bf16.mxu0 0
  %52 = vmatpush1.bf16.msra.mxu0 0
  %53 = vmatprep.subr.bf16.mxu0 0
  %54 = vmatpush1.bf16.msra.mxu0 0
  %55 = vmatprep.subr.bf16.mxu0 0
  %56 = vmatpush1.bf16.msra.mxu0 0
  %57 = vmatprep.subr.bf16.mxu0 0
  %58 = vmatpush1.bf16.msra.mxu0 0
  %59 = vmatprep.subr.bf16.mxu0 0
  %60 = vmatpush1.bf16.msra.mxu0 0
  %61 = vmatprep.subr.bf16.mxu0 0
  %62 = vmatpush1.bf16.msra.mxu0 0
  %63 = vmatprep.subr.bf16.mxu0 0
  %64 = vmatpush1.bf16.msra.mxu0 0
  %65 = vmatprep.subr.bf16.mxu0 0
  %66 = vmatpush1.bf16.msra.mxu0 0
  %67 = vmatprep.subr.bf16.mxu0 0
  %68 = vmatpush1.bf16.msra.mxu0 0
  %69 = vmatprep.subr.bf16.mxu0 0
  %70 = vmatpush1.bf16.msra.mxu0 0
  %71 = vmatprep.subr.bf16.mxu0 0
  %72 = vmatpush1.bf16.msra.mxu0 0
  %73 = vmatprep.subr.bf16.mxu0 0
  %74 = vmatpush1.bf16.msra.mxu0 0
  %75 = vmatprep.mubr.bf16.mxu0 0
  %76 = vmatmul.mubr.bf16.gmra.mrb[0].mxu0 %v37
  %v77 = vpop.f32.mrb[0].mxu0
  %v78 = vadd.f32 %v23, %v77
  %v79 = vpop.f32.mrb[0].mxu0
  %v80 = vpop.f32.mrb[0].mxu0
  %v81 = vadd.f32 %v28, %v80
  %v82 = vpop.f32.mrb[0].mxu0
  %83 = vdwg.mxu0
  %v84 = vmax.f32 %v78, 0.0
  %v85 = vmax.f32 %v81, 0.0
  %v86 = vpack.c.bf16 %v85, %v84
  %v88 = vunpack.c.l.b16 %v86
  %v89 = vunpack.c.h.b16 %v86
  %v90 = vpack.c.b16 %v88, %v88
  %v91 = vpack.c.b16 %v89, %v89
  %vm94 = vcmask 257024
  %95 = vst.msk [vmem:[%s3] sm:$0xf] %vm94, %v90
  %96 = vst.msk [vmem:[%s3 + $0x4] sm:$0xf] %vm94, %v91
  // Predicated region
  $region14: #{cvae_forward.8} parent=0 // pred_check
    _
  $region15: #{cvae_forward.8} parent=0 // pred_check_branch
    %98 = sbr.rel (0) target = $region17
  $region16: #{cvae_forward.8} parent=0 // pred_region
    _
  $region17: #{cvae_forward.8} parent=0 // pred_fallthru
    _
  // Predicated region
  $region18: #{cvae_forward.8} parent=0 // pred_check
    _
  $region19: #{cvae_forward.8} parent=0 // pred_check_branch
    %100 = sbr.rel (0) target = $region21
  $region20: #{cvae_forward.8} parent=0 // pred_region
    _
  $region21: #{cvae_forward.8} parent=0 // pred_fallthru
    _

// kernel: cvae_forward.7
$region0: #{cvae_forward.7}
  #allocation0 [shape = 'u32[]', space=smem, size = 0x4, offset = 0x4, fixed_abs, tag = 'smem constant byte address 0x4 - core index']
  #allocation1 [shape = 'u32[144,128]{1,0:T(1,128)}', space=vmem, size = 0x12000, scoped, tag = 'internal scratch']
  %s0 = inlined_call_operand.vmem [shape: bf16[2,128], index: 0, kind: input, shape index: {}]
  %s1 = inlined_call_operand.vmem [shape: f32[2,8], index: 1, kind: input, shape index: {}]
  %s2 = inlined_call_operand.vmem [shape: f32[2,2], index: 2, kind: input, shape index: {}]
  %s3 = inlined_call_operand.vmem [shape: bf16[128,32], index: 3, kind: input, shape index: {}]
  %s4 = inlined_call_operand.vmem [shape: f32[1,32], index: 4, kind: input, shape index: {}]
  %s5 = inlined_call_operand.vmem [shape: bf16[32,16], index: 5, kind: input, shape index: {}]
  %s6 = inlined_call_operand.vmem [shape: f32[1,16], index: 6, kind: input, shape index: {}]
  %s7 = inlined_call_operand.vmem [shape: bf16[10,32], index: 7, kind: input, shape index: {}]
  %s8 = inlined_call_operand.vmem [shape: f32[1,32], index: 8, kind: input, shape index: {}]
  %s9 = inlined_call_operand.vmem [shape: bf16[32,128], index: 9, kind: input, shape index: {}]
  %s10 = inlined_call_operand.vmem [shape: f32[1,128], index: 10, kind: input, shape index: {}]
  %s11 = inlined_call_operand.hbm [shape: f32[2,8], index: 11, kind: output, shape index: {0}]
  %s12 = inlined_call_operand.hbm [shape: f32[2,8], index: 12, kind: output, shape index: {1}]
  %s13 = inlined_call_operand.vmem [shape: bf16[2,128], index: 13, kind: output, shape index: {2}]
  %14 = xla_tuple %s11, %s12, %s13
  %s15 = sld [smem:[#allocation0]]
  $region70: #{cvae_forward.7} parent=0
    _
  %s17 = ssub.s32 1, %s15
  %s18 = scalar_select 0, %s17, %s15
  $region1: #{cvae_forward.7} parent=0
    #allocation2 [shape = 'u8[1024]{0}', space=vmem, size = 0x400, scoped, tag = 'output window, operand 0, single buffered']
    #allocation3 [shape = 's32[1]{0}', space=sflag, size = 0x4, scoped, tag = 'scoped memory for cvae_forward.7']
    #allocation4 [shape = 'u8[1024]{0}', space=vmem, size = 0x400, scoped, tag = 'output window, operand 1, single buffered']
    #allocation5 [shape = 's32[1]{0}', space=sflag, size = 0x4, scoped, tag = 'scoped memory for cvae_forward.7']
    %19 = vsyncpa [#allocation3], 0
    %20 = vsyncpa [#allocation5], 0
    // Predicated region
    $region2: #{cvae_forward.7} parent=1 // pred_check
      _
    $region3: #{cvae_forward.7} parent=1 // pred_check_branch
      %22 = sbr.rel (0) target = $region5
    $region4: #{cvae_forward.7} parent=1 // pred_region
      _
    $region5: #{cvae_forward.7} parent=1 // pred_fallthru
      _
    // Predicated region
    $region6: #{cvae_forward.7} parent=1 // pred_check
      _
    $region7: #{cvae_forward.7} parent=1 // pred_check_branch
      %24 = sbr.rel (0) target = $region9
    $region8: #{cvae_forward.7} parent=1 // pred_region
      _
    $region9: #{cvae_forward.7} parent=1 // pred_fallthru
      _
    // Predicated region
    $region10: #{cvae_forward.7} parent=1 // pred_check
      _
    $region11: #{cvae_forward.7} parent=1 // pred_check_branch
      %26 = sbr.rel (0) target = $region13
    $region12: #{cvae_forward.7} parent=1 // pred_region
      _
    $region13: #{cvae_forward.7} parent=1 // pred_fallthru
      _
    // Predicated region
    $region14: #{cvae_forward.7} parent=1 // pred_check
      _
    $region15: #{cvae_forward.7} parent=1 // pred_check_branch
      %28 = sbr.rel (0) target = $region17
    $region16: #{cvae_forward.7} parent=1 // pred_region
      _
    $region17: #{cvae_forward.7} parent=1 // pred_fallthru
      _
    // Predicated region
    $region18: #{cvae_forward.7} parent=1 // pred_check
      _
    $region19: #{cvae_forward.7} parent=1 // pred_check_branch
      %30 = sbr.rel (0) target = $region21
    $region20: #{cvae_forward.7} parent=1 // pred_region
      _
    $region21: #{cvae_forward.7} parent=1 // pred_fallthru
      _
    // Predicated region
    $region22: #{cvae_forward.7} parent=1 // pred_check
      _
    $region23: #{cvae_forward.7} parent=1 // pred_check_branch
      %32 = sbr.rel (0) target = $region25
    $region24: #{cvae_forward.7} parent=1 // pred_region
      _
    $region25: #{cvae_forward.7} parent=1 // pred_fallthru
      _
    // Predicated region
    $region26: #{cvae_forward.7} parent=1 // pred_check
      _
    $region27: #{cvae_forward.7} parent=1 // pred_check_branch
      %34 = sbr.rel (0) target = $region29
    $region28: #{cvae_forward.7} parent=1 // pred_region
      _
    $region29: #{cvae_forward.7} parent=1 // pred_fallthru
      _
    // Predicated region
    $region30: #{cvae_forward.7} parent=1 // pred_check
      _
    $region31: #{cvae_forward.7} parent=1 // pred_check_branch
      %36 = sbr.rel (0) target = $region33
    $region32: #{cvae_forward.7} parent=1 // pred_region
      _
    $region33: #{cvae_forward.7} parent=1 // pred_fallthru
      _
    // Predicated region
    $region34: #{cvae_forward.7} parent=1 // pred_check
      _
    $region35: #{cvae_forward.7} parent=1 // pred_check_branch
      %38 = sbr.rel (0) target = $region37
    $region36: #{cvae_forward.7} parent=1 // pred_region
      _
    $region37: #{cvae_forward.7} parent=1 // pred_fallthru
      _
    // Predicated region
    $region38: #{cvae_forward.7} parent=1 // pred_check
      _
    $region39: #{cvae_forward.7} parent=1 // pred_check_branch
      %40 = sbr.rel (0) target = $region41
    $region40: #{cvae_forward.7} parent=1 // pred_region
      _
    $region41: #{cvae_forward.7} parent=1 // pred_fallthru
      _
    // Predicated region
    $region42: #{cvae_forward.7} parent=1 // pred_check
      _
    $region43: #{cvae_forward.7} parent=1 // pred_check_branch
      %42 = sbr.rel (0) target = $region45
    $region44: #{cvae_forward.7} parent=1 // pred_region
      _
    $region45: #{cvae_forward.7} parent=1 // pred_fallthru
      _
    %v44 = vld [vmem:[%s0] sm:$0x1]
    %v45 = vld [vmem:[%s3] sm:$0xf]
    %v46 = vld [vmem:[%s3 + $0x4] sm:$0xf]
    %v47 = vld [vmem:[%s3 + $0x8] sm:$0xf]
    %v48 = vld [vmem:[%s3 + $0xc] sm:$0xf]
    %v49 = vld [vmem:[%s3 + $0x10] sm:$0xf]
    %v50 = vld [vmem:[%s3 + $0x14] sm:$0xf]
    %v51 = vld [vmem:[%s3 + $0x18] sm:$0xf]
    %v52 = vld [vmem:[%s3 + $0x1c] sm:$0xf]
    %v53 = vld [vmem:[%s3 + $0x20] sm:$0xf]
    %v54 = vld [vmem:[%s3 + $0x24] sm:$0xf]
    %v55 = vld [vmem:[%s3 + $0x28] sm:$0xf]
    %v56 = vld [vmem:[%s3 + $0x2c] sm:$0xf]
    %v57 = vld [vmem:[%s3 + $0x30] sm:$0xf]
    %v58 = vld [vmem:[%s3 + $0x34] sm:$0xf]
    %v59 = vld [vmem:[%s3 + $0x38] sm:$0xf]
    %v60 = vld [vmem:[%s3 + $0x3c] sm:$0xf]
    %v61 = vld [vmem:[%s4] sm:$0x1]
    %v63 = vlaneseq
    %v64 = vshrl.u32 %v63, 7
    %v65 = vsub.s32 0, %v64
    %v66 = vrot.slane %v61, %v65
    %v84 = vunpack.c.l.b16 %v45
    %v85 = vunpack.c.l.b16 %v46
    %v86 = vunpack.c.l.b16 %v47
    %v87 = vunpack.c.l.b16 %v48
    %v88 = vunpack.c.l.b16 %v49
    %v89 = vunpack.c.l.b16 %v50
    %v90 = vunpack.c.l.b16 %v51
    %v91 = vunpack.c.l.b16 %v52
    %v92 = vunpack.c.l.b16 %v53
    %v93 = vunpack.c.l.b16 %v54
    %v94 = vunpack.c.l.b16 %v55
    %v95 = vunpack.c.l.b16 %v56
    %v96 = vunpack.c.l.b16 %v57
    %v97 = vunpack.c.l.b16 %v58
    %v98 = vunpack.c.l.b16 %v59
    %v99 = vunpack.c.l.b16 %v60
    %v100 = vpack.c.b16 %v85, %v84
    %v101 = vpack.c.b16 %v87, %v86
    %v102 = vpack.c.b16 %v89, %v88
    %v103 = vpack.c.b16 %v91, %v90
    %v104 = vpack.c.b16 %v93, %v92
    %v105 = vpack.c.b16 %v95, %v94
    %v106 = vpack.c.b16 %v97, %v96
    %v107 = vpack.c.b16 %v99, %v98
    %116 = vmatprep.subr.bf16.mxu0 0
    %117 = vmatpush1.bf16.msra.mxu0 %v100
    %118 = vmatprep.subr.bf16.mxu0 0
    %119 = vmatpush1.bf16.msra.mxu0 %v101
    %120 = vmatprep.subr.bf16.mxu0 0
    %121 = vmatpush1.bf16.msra.mxu0 %v102
    %122 = vmatprep.subr.bf16.mxu0 0
    %123 = vmatpush1.bf16.msra.mxu0 %v103
    %124 = vmatprep.subr.bf16.mxu0 0
    %125 = vmatpush1.bf16.msra.mxu0 %v104
    %126 = vmatprep.subr.bf16.mxu0 0
    %127 = vmatpush1.bf16.msra.mxu0 %v105
    %128 = vmatprep.subr.bf16.mxu0 0
    %129 = vmatpush1.bf16.msra.mxu0 %v106
    %130 = vmatprep.subr.bf16.mxu0 0
    %131 = vmatpush1.bf16.msra.mxu0 %v107
    %132 = vmatprep.subr.bf16.mxu0 0
    %133 = vmatpush1.bf16.msra.mxu0 0
    %134 = vmatprep.subr.bf16.mxu0 0
    %135 = vmatpush1.bf16.msra.mxu0 0
    %136 = vmatprep.subr.bf16.mxu0 0
    %137 = vmatpush1.bf16.msra.mxu0 0
    %138 = vmatprep.subr.bf16.mxu0 0
    %139 = vmatpush1.bf16.msra.mxu0 0
    %140 = vmatprep.subr.bf16.mxu0 0
    %141 = vmatpush1.bf16.msra.mxu0 0
    %142 = vmatprep.subr.bf16.mxu0 0
    %143 = vmatpush1.bf16.msra.mxu0 0
    %144 = vmatprep.subr.bf16.mxu0 0
    %145 = vmatpush1.bf16.msra.mxu0 0
    %146 = vmatprep.subr.bf16.mxu0 0
    %147 = vmatpush1.bf16.msra.mxu0 0
    %148 = vmatprep.mubr.bf16.mxu0 0
    %149 = vmatmul.mubr.bf16.gmra.mrb[0].mxu0 %v44
    %v150 = vpop.f32.mrb[0].mxu0
    %v151 = vadd.f32 %v66, %v150
    %v152 = vpop.f32.mrb[0].mxu0
    %v153 = vpop.f32.mrb[0].mxu0
    %v154 = vpop.f32.mrb[0].mxu0
    %155 = vdwg.mxu0
    %v156 = vmax.f32 %v151, 0.0
    %v157 = vpack.c.bf16 %v156, %v156
    %v158 = vld [vmem:[%s5] sm:$0xf]
    %v159 = vld [vmem:[%s5 + $0x4] sm:$0xf]
    %v160 = vld [vmem:[%s5 + $0x8] sm:$0xf]
    %v161 = vld [vmem:[%s5 + $0xc] sm:$0xf]
    %v162 = vld [vmem:[%s6] sm:$0x1]
    %v164 = vlaneseq
    %v165 = vshrl.u32 %v164, 7
    %v166 = vsub.s32 0, %v165
    %v167 = vrot.slane %v162, %v166
    %v173 = vunpack.c.l.b16 %v158
    %v174 = vunpack.c.l.b16 %v159
    %v175 = vunpack.c.l.b16 %v160
    %v176 = vunpack.c.l.b16 %v161
    %v177 = vpack.c.b16 %v174, %v173
    %v178 = vpack.c.b16 %v176, %v175
    %vm181 = vcmask 261120
    %v183 = vsel %vm181, %v157, 0
    %185 = vmatprep.subr.bf16.mxu0 0
    %186 = vmatpush1.bf16.msra.mxu0 %v177
    %187 = vmatprep.subr.bf16.mxu0 0
    %188 = vmatpush1.bf16.msra.mxu0 %v178
    %189 = vmatprep.subr.bf16.mxu0 0
    %190 = vmatpush1.bf16.msra.mxu0 0
    %191 = vmatprep.subr.bf16.mxu0 0
    %192 = vmatpush1.bf16.msra.mxu0 0
    %193 = vmatprep.subr.bf16.mxu0 0
    %194 = vmatpush1.bf16.msra.mxu0 0
    %195 = vmatprep.subr.bf16.mxu0 0
    %196 = vmatpush1.bf16.msra.mxu0 0
    %197 = vmatprep.subr.bf16.mxu0 0
    %198 = vmatpush1.bf16.msra.mxu0 0
    %199 = vmatprep.subr.bf16.mxu0 0
    %200 = vmatpush1.bf16.msra.mxu0 0
    %201 = vmatprep.subr.bf16.mxu0 0
    %202 = vmatpush1.bf16.msra.mxu0 0
    %203 = vmatprep.subr.bf16.mxu0 0
    %204 = vmatpush1.bf16.msra.mxu0 0
    %205 = vmatprep.subr.bf16.mxu0 0
    %206 = vmatpush1.bf16.msra.mxu0 0
    %207 = vmatprep.subr.bf16.mxu0 0
    %208 = vmatpush1.bf16.msra.mxu0 0
    %209 = vmatprep.subr.bf16.mxu0 0
    %210 = vmatpush1.bf16.msra.mxu0 0
    %211 = vmatprep.subr.bf16.mxu0 0
    %212 = vmatpush1.bf16.msra.mxu0 0
    %213 = vmatprep.subr.bf16.mxu0 0
    %214 = vmatpush1.bf16.msra.mxu0 0
    %215 = vmatprep.subr.bf16.mxu0 0
    %216 = vmatpush1.bf16.msra.mxu0 0
    %217 = vmatprep.mubr.bf16.mxu0 0
    %218 = vmatmul.mubr.bf16.gmra.mrb[0].mxu0 %v183
    %v219 = vpop.f32.mrb[0].mxu0
    %v220 = vadd.f32 %v167, %v219
    %v221 = vpop.f32.mrb[0].mxu0
    %v222 = vpop.f32.mrb[0].mxu0
    %v223 = vpop.f32.mrb[0].mxu0
    %224 = vdwg.mxu0
    %vm225 = vcmask 58368
    %226 = vst.msk [vmem:[#allocation2] sm:$0x3] %vm225, %v220
    %228 = vrot.lane.b32.xlu0 %v220, 120
    %v229 = vpop.permute.xlu0 %228
    %231 = vst.msk [vmem:[#allocation4] sm:$0x3] %vm225, %v229
    %v232 = vld [vmem:[%s1] sm:$0x3]
    %v233 = vmul.f32 %v220, 0.5
    %v234 = vmul.f32 %v233, 1.442695
    %v235 = vpow.pop %v234
    %237 = vrot.lane.b32.xlu0 %v235, 120
    %v238 = vpop.permute.xlu0 %237
    %v240 = vmul.f32 %v232, %v238
    %v241 = vadd.f32 %v220, %v240
    %v242 = vld [vmem:[%s7] sm:$0xf]
    %v243 = vld [vmem:[%s7 + $0x4] sm:$0x1]
    %v244 = vunpack.c.l.bf16 %v242
    %v245 = vunpack.c.l.bf16 %v243
    %v246 = vld [vmem:[%s2] sm:$0x3]
    %vm247 = vcmask 15360
    %v249 = vsel %vm247, %v246, 0
    %vm251 = vcmask 1041408
    %v253 = vsel %vm251, %v245, 0
    %255 = vmatprep.subr.mxu0 0.0
    %256 = vmatpush1.msra.mxu0 %v253
    %257 = vmatprep.subr.mxu0 0.0
    %258 = vmatpush1.msra.mxu0 0.0
    %259 = vmatprep.subr.mxu0 0.0
    %260 = vmatpush1.msra.mxu0 0.0
    %261 = vmatprep.subr.mxu0 0.0
    %262 = vmatpush1.msra.mxu0 0.0
    %263 = vmatprep.subr.mxu0 0.0
    %264 = vmatpush1.msra.mxu0 0.0
    %265 = vmatprep.subr.mxu0 0.0
    %266 = vmatpush1.msra.mxu0 0.0
    %267 = vmatprep.subr.mxu0 0.0
    %268 = vmatpush1.msra.mxu0 0.0
    %269 = vmatprep.subr.mxu0 0.0
    %270 = vmatpush1.msra.mxu0 0.0
    %271 = vmatprep.subr.mxu0 0.0
    %272 = vmatpush1.msra.mxu0 0.0
    %273 = vmatprep.subr.mxu0 0.0
    %274 = vmatpush1.msra.mxu0 0.0
    %275 = vmatprep.subr.mxu0 0.0
    %276 = vmatpush1.msra.mxu0 0.0
    %277 = vmatprep.subr.mxu0 0.0
    %278 = vmatpush1.msra.mxu0 0.0
    %279 = vmatprep.subr.mxu0 0.0
    %280 = vmatpush1.msra.mxu0 0.0
    %281 = vmatprep.subr.mxu0 0.0
    %282 = vmatpush1.msra.mxu0 0.0
    %283 = vmatprep.subr.mxu0 0.0
    %284 = vmatpush1.msra.mxu0 0.0
    %285 = vmatprep.subr.mxu0 0.0
    %286 = vmatpush1.msra.mxu0 0.0
    %287 = vmatprep.subr.mxu0 0.0
    %288 = vmatpush1.msra.mxu0 0.0
    %289 = vmatprep.subr.mxu0 0.0
    %290 = vmatpush1.msra.mxu0 0.0
    %291 = vmatprep.subr.mxu0 0.0
    %292 = vmatpush1.msra.mxu0 0.0
    %293 = vmatprep.subr.mxu0 0.0
    %294 = vmatpush1.msra.mxu0 0.0
    %295 = vmatprep.subr.mxu0 0.0
    %296 = vmatpush1.msra.mxu0 0.0
    %297 = vmatprep.subr.mxu0 0.0
    %298 = vmatpush1.msra.mxu0 0.0
    %299 = vmatprep.subr.mxu0 0.0
    %300 = vmatpush1.msra.mxu0 0.0
    %301 = vmatprep.subr.mxu0 0.0
    %302 = vmatpush1.msra.mxu0 0.0
    %303 = vmatprep.subr.mxu0 0.0
    %304 = vmatpush1.msra.mxu0 0.0
    %305 = vmatprep.subr.mxu0 0.0
    %306 = vmatpush1.msra.mxu0 0.0
    %307 = vmatprep.subr.mxu0 0.0
    %308 = vmatpush1.msra.mxu0 0.0
    %309 = vmatprep.subr.mxu0 0.0
    %310 = vmatpush1.msra.mxu0 0.0
    %311 = vmatprep.subr.mxu0 0.0
    %312 = vmatpush1.msra.mxu0 0.0
    %313 = vmatprep.subr.mxu0 0.0
    %314 = vmatpush1.msra.mxu0 0.0
    %315 = vmatprep.subr.mxu0 0.0
    %316 = vmatpush1.msra.mxu0 0.0
    %317 = vmatprep.subr.mxu0 0.0
    %318 = vmatpush1.msra.mxu0 0.0
    %319 = vmatprep.mubr.f32.mxu0 0.0
    %320 = vmatmul.mubr.f32.gmra.mrb[0].mxu0 %v249
    %v321 = vpop.f32.mrb[0].mxu0
    %v322 = vadd.f32 0.0, %v321
    %v323 = vpop.f32.mrb[0].mxu0
    %324 = vdwg.mxu0
    %vm325 = vcmask 64512
    %v327 = vsel %vm325, %v241, 0
    %329 = vmatprep.subr.mxu0 0.0
    %330 = vmatpush1.msra.mxu0 %v244
    %331 = vmatprep.subr.mxu0 0.0
    %332 = vmatpush1.msra.mxu0 0.0
    %333 = vmatprep.subr.mxu0 0.0
    %334 = vmatpush1.msra.mxu0 0.0
    %335 = vmatprep.subr.mxu0 0.0
    %336 = vmatpush1.msra.mxu0 0.0
    %337 = vmatprep.subr.mxu0 0.0
    %338 = vmatpush1.msra.mxu0 0.0
    %339 = vmatprep.subr.mxu0 0.0
    %340 = vmatpush1.msra.mxu0 0.0
    %341 = vmatprep.subr.mxu0 0.0
    %342 = vmatpush1.msra.mxu0 0.0
    %343 = vmatprep.subr.mxu0 0.0
    %344 = vmatpush1.msra.mxu0 0.0
    %345 = vmatprep.subr.mxu0 0.0
    %346 = vmatpush1.msra.mxu0 0.0
    %347 = vmatprep.subr.mxu0 0.0
    %348 = vmatpush1.msra.mxu0 0.0
    %349 = vmatprep.subr.mxu0 0.0
    %350 = vmatpush1.msra.mxu0 0.0
    %351 = vmatprep.subr.mxu0 0.0
    %352 = vmatpush1.msra.mxu0 0.0
    %353 = vmatprep.subr.mxu0 0.0
    %354 = vmatpush1.msra.mxu0 0.0
    %355 = vmatprep.subr.mxu0 0.0
    %356 = vmatpush1.msra.mxu0 0.0
    %357 = vmatprep.subr.mxu0 0.0
    %358 = vmatpush1.msra.mxu0 0.0
    %359 = vmatprep.subr.mxu0 0.0
    %360 = vmatpush1.msra.mxu0 0.0
    %361 = vmatprep.subr.mxu0 0.0
    %362 = vmatpush1.msra.mxu0 0.0
    %363 = vmatprep.subr.mxu0 0.0
    %364 = vmatpush1.msra.mxu0 0.0
    %365 = vmatprep.subr.mxu0 0.0
    %366 = vmatpush1.msra.mxu0 0.0
    %367 = vmatprep.subr.mxu0 0.0
    %368 = vmatpush1.msra.mxu0 0.0
    %369 = vmatprep.subr.mxu0 0.0
    %370 = vmatpush1.msra.mxu0 0.0
    %371 = vmatprep.subr.mxu0 0.0
    %372 = vmatpush1.msra.mxu0 0.0
    %373 = vmatprep.subr.mxu0 0.0
    %374 = vmatpush1.msra.mxu0 0.0
    %375 = vmatprep.subr.mxu0 0.0
    %376 = vmatpush1.msra.mxu0 0.0
    %377 = vmatprep.subr.mxu0 0.0
    %378 = vmatpush1.msra.mxu0 0.0
    %379 = vmatprep.subr.mxu0 0.0
    %380 = vmatpush1.msra.mxu0 0.0
    %381 = vmatprep.subr.mxu0 0.0
    %382 = vmatpush1.msra.mxu0 0.0
    %383 = vmatprep.subr.mxu0 0.0
    %384 = vmatpush1.msra.mxu0 0.0
    %385 = vmatprep.subr.mxu0 0.0
    %386 = vmatpush1.msra.mxu0 0.0
    %387 = vmatprep.subr.mxu0 0.0
    %388 = vmatpush1.msra.mxu0 0.0
    %389 = vmatprep.subr.mxu0 0.0
    %390 = vmatpush1.msra.mxu0 0.0
    %391 = vmatprep.subr.mxu0 0.0
    %392 = vmatpush1.msra.mxu0 0.0
    %393 = vmatprep.mubr.f32.mxu0 0.0
    %394 = vmatmul.mubr.f32.gmra.mrb[0].mxu0 %v327
    %v395 = vpop.f32.mrb[0].mxu0
    %v396 = vadd.f32 %v322, %v395
    %v397 = vpop.f32.mrb[0].mxu0
    %398 = vdwg.mxu0
    %v399 = vld [vmem:[%s8] sm:$0x1]
    %v401 = vlaneseq
    %v402 = vshrl.u32 %v401, 7
    %v403 = vsub.s32 0, %v402
    %v404 = vrot.slane %v399, %v403
    %v406 = vadd.f32 %v396, %v404
    %v407 = vmax.f32 %v406, 0.0
    %v408 = vpack.c.bf16 %v407, %v407
    %v409 = vld [vmem:[%s9] sm:$0xf]
    %v410 = vld [vmem:[%s9 + $0x4] sm:$0xf]
    %v411 = vld [vmem:[%s9 + $0x8] sm:$0xf]
    %v412 = vld [vmem:[%s9 + $0xc] sm:$0xf]
    %v413 = vld [vmem:[%s10] sm:$0x1]
    %v415 = vlaneseq
    %v416 = vshrl.u32 %v415, 7
    %v417 = vsub.s32 0, %v416
    %v418 = vrot.slane %v413, %v417
    %v424 = vunpack.c.l.b16 %v409
    %v425 = vunpack.c.l.b16 %v410
    %v426 = vunpack.c.l.b16 %v411
    %v427 = vunpack.c.l.b16 %v412
    %v428 = vpack.c.b16 %v425, %v424
    %v429 = vpack.c.b16 %v427, %v426
    %v433 = vsel %vm181, %v408, 0
    %435 = vmatprep.subr.bf16.mxu0 0
    %436 = vmatpush1.bf16.msra.mxu0 %v428
    %437 = vmatprep.subr.bf16.mxu0 0
    %438 = vmatpush1.bf16.msra.mxu0 %v429
    %439 = vmatprep.subr.bf16.mxu0 0
    %440 = vmatpush1.bf16.msra.mxu0 0
    %441 = vmatprep.subr.bf16.mxu0 0
    %442 = vmatpush1.bf16.msra.mxu0 0
    %443 = vmatprep.subr.bf16.mxu0 0
    %444 = vmatpush1.bf16.msra.mxu0 0
    %445 = vmatprep.subr.bf16.mxu0 0
    %446 = vmatpush1.bf16.msra.mxu0 0
    %447 = vmatprep.subr.bf16.mxu0 0
    %448 = vmatpush1.bf16.msra.mxu0 0
    %449 = vmatprep.subr.bf16.mxu0 0
    %450 = vmatpush1.bf16.msra.mxu0 0
    %451 = vmatprep.subr.bf16.mxu0 0
    %452 = vmatpush1.bf16.msra.mxu0 0
    %453 = vmatprep.subr.bf16.mxu0 0
    %454 = vmatpush1.bf16.msra.mxu0 0
    %455 = vmatprep.subr.bf16.mxu0 0
    %456 = vmatpush1.bf16.msra.mxu0 0
    %457 = vmatprep.subr.bf16.mxu0 0
    %458 = vmatpush1.bf16.msra.mxu0 0
    %459 = vmatprep.subr.bf16.mxu0 0
    %460 = vmatpush1.bf16.msra.mxu0 0
    %461 = vmatprep.subr.bf16.mxu0 0
    %462 = vmatpush1.bf16.msra.mxu0 0
    %463 = vmatprep.subr.bf16.mxu0 0
    %464 = vmatpush1.bf16.msra.mxu0 0
    %465 = vmatprep.subr.bf16.mxu0 0
    %466 = vmatpush1.bf16.msra.mxu0 0
    %467 = vmatprep.mubr.bf16.mxu0 0
    %468 = vmatmul.mubr.bf16.gmra.mrb[0].mxu0 %v433
    %v469 = vpop.f32.mrb[0].mxu0
    %v470 = vadd.f32 %v418, %v469
    %v471 = vpop.f32.mrb[0].mxu0
    %v472 = vpop.f32.mrb[0].mxu0
    %v473 = vpop.f32.mrb[0].mxu0
    %474 = vdwg.mxu0
    %v475 = vmax.f32 %v470, 0.0
    %v476 = vpack.c.bf16 %v475, %v475
    %477 = vst [vmem:[%s13] sm:$0x1] %v476
    // Predicated region
    $region46: #{cvae_forward.7} parent=1 // pred_check
      _
    $region47: #{cvae_forward.7} parent=1 // pred_check_branch
      %479 = sbr.rel (0) target = $region49
    $region48: #{cvae_forward.7} parent=1 // pred_region
      %s481 = ssub.s32 32, 32
      %482 = vsyncadd [#allocation3], %s481
      %s484 = sshll.u32 [#allocation2], 4
      %s485 = int_to_ptr.vmem [resolvable:$true] %s484
      %487 = dma.vmem_to_hbm [thread:$0]  %s485, 32, %s11, [#allocation3]
    $region49: #{cvae_forward.7} parent=1 // pred_fallthru
      _
    // Predicated region
    $region50: #{cvae_forward.7} parent=1 // pred_check
      _
    $region51: #{cvae_forward.7} parent=1 // pred_check_branch
      %489 = sbr.rel (0) target = $region53
    $region52: #{cvae_forward.7} parent=1 // pred_region
      %s491 = ssub.s32 32, 32
      %492 = vsyncadd [#allocation5], %s491
      %s494 = sshll.u32 [#allocation4], 4
      %s495 = int_to_ptr.vmem [resolvable:$true] %s494
      %497 = dma.vmem_to_hbm [thread:$0]  %s495, 32, %s12, [#allocation5]
    $region53: #{cvae_forward.7} parent=1 // pred_fallthru
      _
    // Predicated region
    $region54: #{cvae_forward.7} parent=1 // pred_check
      _
    $region55: #{cvae_forward.7} parent=1 // pred_check_branch
      %499 = sbr.rel (0) target = $region57
    $region56: #{cvae_forward.7} parent=1 // pred_region
      _
    $region57: #{cvae_forward.7} parent=1 // pred_fallthru
      _
    // Predicated region
    $region58: #{cvae_forward.7} parent=1 // pred_check
      _
    $region59: #{cvae_forward.7} parent=1 // pred_check_branch
      %501 = sbr.rel (0) target = $region61
    $region60: #{cvae_forward.7} parent=1 // pred_region
      %502 = dma.done [#allocation3], 32
    $region61: #{cvae_forward.7} parent=1 // pred_fallthru
      _
    // Predicated region
    $region62: #{cvae_forward.7} parent=1 // pred_check
      _
    $region63: #{cvae_forward.7} parent=1 // pred_check_branch
      %504 = sbr.rel (0) target = $region65
    $region64: #{cvae_forward.7} parent=1 // pred_region
      %505 = dma.done [#allocation5], 32
    $region65: #{cvae_forward.7} parent=1 // pred_fallthru
      _
    // Predicated region
    $region66: #{cvae_forward.7} parent=1 // pred_check
      _
    $region67: #{cvae_forward.7} parent=1 // pred_check_branch
      %507 = sbr.rel (0) target = $region69
    $region68: #{cvae_forward.7} parent=1 // pred_region
      _
    $region69: #{cvae_forward.7} parent=1 // pred_fallthru
      _
    %508 = vsyncpa [#allocation3], 1
    %509 = vsyncpa [#allocation5], 1

// kernel: cvae_forward.9
$region0: #{cvae_forward.9}
  #allocation0 [shape = 'u32[]', space=smem, size = 0x4, offset = 0x4, fixed_abs, tag = 'smem constant byte address 0x4 - core index']
  #allocation1 [shape = 'u32[144,128]{1,0:T(1,128)}', space=vmem, size = 0x12000, scoped, tag = 'internal scratch']
  %s0 = inlined_call_operand.vmem [shape: bf16[4,4], index: 0, kind: input, shape index: {}]
  %s1 = inlined_call_operand.vmem [shape: bf16[4,128], index: 1, kind: input, shape index: {}]
  %s2 = inlined_call_operand.vmem [shape: f32[4,1], index: 2, kind: input, shape index: {}]
  %s3 = inlined_call_operand.vmem [shape: f32[4,128], index: 3, kind: output, shape index: {}]
  %s4 = sld [smem:[#allocation0]]
  $region22: #{cvae_forward.9} parent=0
    _
  %s6 = ssub.s32 1, %s4
  %s7 = scalar_select 0, %s6, %s4
  // Predicated region
  $region2: #{cvae_forward.9} parent=0 // pred_check
    _
  $region3: #{cvae_forward.9} parent=0 // pred_check_branch
    %9 = sbr.rel (0) target = $region5
  $region4: #{cvae_forward.9} parent=0 // pred_region
    _
  $region5: #{cvae_forward.9} parent=0 // pred_fallthru
    _
  // Predicated region
  $region6: #{cvae_forward.9} parent=0 // pred_check
    _
  $region7: #{cvae_forward.9} parent=0 // pred_check_branch
    %11 = sbr.rel (0) target = $region9
  $region8: #{cvae_forward.9} parent=0 // pred_region
    _
  $region9: #{cvae_forward.9} parent=0 // pred_fallthru
    _
  // Predicated region
  $region10: #{cvae_forward.9} parent=0 // pred_check
    _
  $region11: #{cvae_forward.9} parent=0 // pred_check_branch
    %13 = sbr.rel (0) target = $region13
  $region12: #{cvae_forward.9} parent=0 // pred_region
    _
  $region13: #{cvae_forward.9} parent=0 // pred_fallthru
    _
  %v15 = vld [vmem:[%s0] sm:$0x3]
  %v16 = vld [vmem:[%s1] sm:$0x3]
  %v17 = vld [vmem:[%s2] sm:$0xf]
  %19 = vset.pattern.permute.xlu0 0
  %20 = vperm.xlu0 %19, %v17
  %v21 = vpop.permute.xlu0 %20
  %vm23 = vcmask 31744
  %v25 = vsel %vm23, %v15, 0
  %vm27 = vcmask 1041408
  %v29 = vsel %vm27, %v16, 0
  %31 = vmatprep.subr.bf16.mxu0 0
  %32 = vmatpush1.bf16.msra.mxu0 %v29
  %33 = vmatprep.subr.bf16.mxu0 0
  %34 = vmatpush1.bf16.msra.mxu0 0
  %35 = vmatprep.subr.bf16.mxu0 0
  %36 = vmatpush1.bf16.msra.mxu0 0
  %37 = vmatprep.subr.bf16.mxu0 0
  %38 = vmatpush1.bf16.msra.mxu0 0
  %39 = vmatprep.subr.bf16.mxu0 0
  %40 = vmatpush1.bf16.msra.mxu0 0
  %41 = vmatprep.subr.bf16.mxu0 0
  %42 = vmatpush1.bf16.msra.mxu0 0
  %43 = vmatprep.subr.bf16.mxu0 0
  %44 = vmatpush1.bf16.msra.mxu0 0
  %45 = vmatprep.subr.bf16.mxu0 0
  %46 = vmatpush1.bf16.msra.mxu0 0
  %47 = vmatprep.subr.bf16.mxu0 0
  %48 = vmatpush1.bf16.msra.mxu0 0
  %49 = vmatprep.subr.bf16.mxu0 0
  %50 = vmatpush1.bf16.msra.mxu0 0
  %51 = vmatprep.subr.bf16.mxu0 0
  %52 = vmatpush1.bf16.msra.mxu0 0
  %53 = vmatprep.subr.bf16.mxu0 0
  %54 = vmatpush1.bf16.msra.mxu0 0
  %55 = vmatprep.subr.bf16.mxu0 0
  %56 = vmatpush1.bf16.msra.mxu0 0
  %57 = vmatprep.subr.bf16.mxu0 0
  %58 = vmatpush1.bf16.msra.mxu0 0
  %59 = vmatprep.subr.bf16.mxu0 0
  %60 = vmatpush1.bf16.msra.mxu0 0
  %61 = vmatprep.subr.bf16.mxu0 0
  %62 = vmatpush1.bf16.msra.mxu0 0
  %63 = vmatprep.mubr.bf16.mxu0 0
  %64 = vmatmul.mubr.bf16.gmra.mrb[0].mxu0 %v25
  %v65 = vpop.f32.mrb[0].mxu0
  %v66 = vadd.f32 %v21, %v65
  %v67 = vpop.f32.mrb[0].mxu0
  %v68 = vpop.f32.mrb[0].mxu0
  %v69 = vpop.f32.mrb[0].mxu0
  %70 = vdwg.mxu0
  %v71 = vsub.f32 0.0, %v66
  %v72 = vmul.f32 %v71, 1.442695
  %v73 = vpow.pop %v72
  %v74 = vadd.f32 %v73, 1.0
  %v75 = vrcp.pop %v74
  %76 = vst [vmem:[%s3] sm:$0xf] %v75
  // Predicated region
  $region14: #{cvae_forward.9} parent=0 // pred_check
    _
  $region15: #{cvae_forward.9} parent=0 // pred_check_branch
    %78 = sbr.rel (0) target = $region17
  $region16: #{cvae_forward.9} parent=0 // pred_region
    _
  $region17: #{cvae_forward.9} parent=0 // pred_fallthru
    _
  // Predicated region
  $region18: #{cvae_forward.9} parent=0 // pred_check
    _
  $region19: #{cvae_forward.9} parent=0 // pred_check_branch
    %80 = sbr.rel (0) target = $region21
  $region20: #{cvae_forward.9} parent=0 // pred_region
    _
  $region21: #{cvae_forward.9} parent=0 // pred_fallthru
    _

</llo_original>
